<compile_context>
chip_gen: v5e
topology: v5e:2x2
jax: 0.10.0
libtpu: 0.0.40
codegen_flags: <defaults>
</compile_context>

<pallas_src>
import jax
import jax.numpy as jnp
from jax import lax
from jax.experimental import pallas as pl
from jax.experimental.pallas import tpu as pltpu


NUM_CLASSES = 4
FEAT_C = 1280          # EfficientNet-B0 head width (input of the replaced _fc)
FEAT_HW = 7            # B0 final spatial resolution for 224x224 inputs
K_PAD = 128            # classes padded to one full lane group (lane-dense store)


def _head_kernel(x_ref, w_ref, b_ref, o_ref):
    """Fused global-average-pool + linear classifier head for one batch tile.

    x_ref: [Bt, C, P]  NCHW feature maps with H*W flattened to P (no transpose)
    w_ref: [C, Kp]     fc weight, transposed and zero-padded to Kp=128
    b_ref: [1, Kp]     fc bias (f32), zero-padded
    o_ref: [Bt, Kp]    padded logits (f32)
    """
    bt, _, p = x_ref.shape
    inv_p = 1.0 / p
    for b in range(bt):  # static unroll over the batch tile
        # fc-first on the MXU with a transposed LHS: y = x_b^T @ W -> [P, Kp].
        # Keeps the NCHW layout (no relayout, no f32 copy of the feature tile);
        # accumulation is f32 via preferred_element_type.
        y = lax.dot_general(
            x_ref[b], w_ref[...],
            dimension_numbers=(((0,), (0,)), ((), ())),
            preferred_element_type=jnp.float32)
        # Global average pool now collapses to a cheap f32 sublane sum over P.
        logits = jnp.sum(y, axis=0, keepdims=True) * inv_p + b_ref[...]
        o_ref[pl.ds(b, 1), :] = logits.astype(o_ref.dtype)


def corn_disease_head(features_nchw, fc_weight, fc_bias, *, block_batch=16):
    """features_nchw: [N, C=1280, H, W] (PyTorch NCHW layout; bf16 recommended)
       fc_weight:     [num_classes, 1280] (PyTorch nn.Linear layout, f32)
       fc_bias:       [num_classes] (f32)
       returns logits [N, num_classes] (float32)
    """
    n, c, h, w = features_nchw.shape
    k = fc_weight.shape[0]
    p = h * w

    # Free contiguous reshape only — NO NCHW->NHWC transpose on the host side.
    x = features_nchw.reshape(n, c, p)

    # Batch tile: amortize grid-step overhead while keeping VMEM modest.
    # (Bt=16 bf16 -> ~10.5 MiB double-buffered; raise to 32 on v6e/v7x if desired.)
    if n <= block_batch:
        bt = n
    else:
        bt = ((block_batch + 7) // 8) * 8   # multi-step grid needs bt % 8 == 0
    n_pad = pl.cdiv(n, bt) * bt
    if n_pad != n:
        x = jnp.pad(x, ((0, n_pad - n), (0, 0), (0, 0)))

    # Weight [K, C] -> [C, Kp] zero-padded (lane-dense output), cast to the
    # feature dtype so the MXU runs a native (e.g. bf16) pass; bias stays f32.
    w_cm = jnp.zeros((c, K_PAD), jnp.float32).at[:, :k].set(
        fc_weight.T.astype(jnp.float32))
    w_cm = w_cm.astype(x.dtype)
    b2d = jnp.zeros((1, K_PAD), jnp.float32).at[:, :k].set(
        fc_bias.astype(jnp.float32))

    grid = (n_pad // bt,)
    out = pl.pallas_call(
        _head_kernel,
        out_shape=jax.ShapeDtypeStruct((n_pad, K_PAD), jnp.float32),
        grid_spec=pltpu.PrefetchScalarGridSpec(
            num_scalar_prefetch=0,
            grid=grid,
            in_specs=[
                pl.BlockSpec((bt, c, p), lambda i: (i, 0, 0)),   # NCHW features
                pl.BlockSpec((c, K_PAD), lambda i: (0, 0)),      # shared weight
                pl.BlockSpec((1, K_PAD), lambda i: (0, 0)),      # shared bias
            ],
            out_specs=pl.BlockSpec((bt, K_PAD), lambda i: (i, 0)),
        ),
        compiler_params=pltpu.CompilerParams(
            dimension_semantics=("parallel",),      # batch axis; shards on v7x 2-TC
            vmem_limit_bytes=32 * 1024 * 1024),
    )(x, w_cm, b2d)
    return out[:n, :k]


if __name__ == "__main__":
    key = jax.random.PRNGKey(0)
    k_feat, k_w, k_b = jax.random.split(key, 3)

    # Backbone feature maps [N=2, C=1280, H=7, W=7] (NCHW, as PyTorch produces),
    # stored in bf16 as the memory-bound head prefers.
    batch = 2
    feats = jax.random.normal(
        k_feat, (batch, FEAT_C, FEAT_HW, FEAT_HW),
        dtype=jnp.float32).astype(jnp.bfloat16)

    # Deterministic synthetic parameters for the replaced _fc layer
    # (nn.Linear(1280, num_classes): weight [K, 1280], bias [K]).
    fc_w = jax.random.normal(k_w, (NUM_CLASSES, FEAT_C), dtype=jnp.float32) * 0.02
    fc_b = jax.random.normal(k_b, (NUM_CLASSES,), dtype=jnp.float32) * 0.01

    logits = corn_disease_head(feats, fc_w, fc_b)
    logits = jax.block_until_ready(logits)

    # Pure-JAX f32 reference of the same head (GAP over H,W then x @ W^T + b).
    feats_f32 = feats.astype(jnp.float32)
    ref = jnp.mean(feats_f32, axis=(2, 3)) @ fc_w.T + fc_b
    assert logits.shape == (batch, NUM_CLASSES)
    assert jnp.allclose(logits, ref, atol=3e-3, rtol=3e-2), "mismatch vs reference"

    print("KERNEL_OK")
</pallas_src>

<mosaic_0001>
module attributes {stable_mosaic.version = 11 : i64} {
  func.func @_head_kernel(%arg0: i32, %arg1: memref<2x1280x49xbf16, #tpu.memory_space<vmem>>, %arg2: memref<1280x128xbf16, #tpu.memory_space<vmem>>, %arg3: memref<1x128xf32, #tpu.memory_space<vmem>>, %arg4: memref<2x128xf32, #tpu.memory_space<vmem>>) attributes {dimension_semantics = [#tpu.dimension_semantics<parallel>], iteration_bounds = array<i64: 1>, scalar_prefetch = 0 : i64, scratch_operands = 0 : i64, tpu.core_type = #tpu.core_type<tc>, window_params = [{transform_indices = @transform_0, window_bounds = array<i64: 2, 1280, 49>}, {pipeline_mode = #tpu.pipeline_mode<synchronous>, transform_indices = @transform_1, window_bounds = array<i64: 1280, 128>}, {pipeline_mode = #tpu.pipeline_mode<synchronous>, transform_indices = @transform_2, window_bounds = array<i64: 1, 128>}, {transform_indices = @transform_3, window_bounds = array<i64: 2, 128>}]} {
    %c0 = arith.constant 0 : index
    %c0_0 = arith.constant 0 : index
    %c0_1 = arith.constant 0 : index
    %0 = vector.load %arg1[%c0, %c0_0, %c0_1] : memref<2x1280x49xbf16, #tpu.memory_space<vmem>>, vector<1x1280x49xbf16>
    %1 = vector.shape_cast %0 : vector<1x1280x49xbf16> to vector<1280x49xbf16>
    %c0_2 = arith.constant 0 : index
    %c0_3 = arith.constant 0 : index
    %2 = vector.load %arg2[%c0_2, %c0_3] : memref<1280x128xbf16, #tpu.memory_space<vmem>>, vector<1280x128xbf16>
    %cst = arith.constant dense<0.000000e+00> : vector<49x128xf32>
    %3 = tpu.matmul %1, %2, %cst {dimension_numbers = #tpu.dot_dimension_numbers<[0], [0], [1], [1], [0, 1, 1, 1], [], []>} : vector<1280x49xbf16>, vector<1280x128xbf16>, vector<49x128xf32> -> vector<49x128xf32>
    %cst_4 = arith.constant dense<0.000000e+00> : vector<128xf32>
    %4 = vector.multi_reduction <add>, %3, %cst_4 [0] : vector<49x128xf32> to vector<128xf32>
    %5 = vector.shape_cast %4 : vector<128xf32> to vector<1x128xf32>
    %cst_5 = arith.constant 0.0204081628 : f32
    %6 = vector.broadcast %cst_5 : f32 to vector<1x128xf32>
    %7 = arith.mulf %5, %6 : vector<1x128xf32>
    %c0_6 = arith.constant 0 : index
    %c0_7 = arith.constant 0 : index
    %8 = vector.load %arg3[%c0_6, %c0_7] : memref<1x128xf32, #tpu.memory_space<vmem>>, vector<1x128xf32>
    %9 = arith.addf %7, %8 : vector<1x128xf32>
    %c0_8 = arith.constant 0 : index
    %c0_9 = arith.constant 0 : index
    %10 = vector.load %arg4[%c0_8, %c0_9] : memref<2x128xf32, #tpu.memory_space<vmem>>, vector<1x128xf32>
    tpu.vector_store %arg4[%c0_8, %c0_9], %9 {strides = array<i32>} : memref<2x128xf32, #tpu.memory_space<vmem>>, vector<1x128xf32>,
    %c1 = arith.constant 1 : index
    %c0_10 = arith.constant 0 : index
    %c0_11 = arith.constant 0 : index
    %11 = vector.load %arg1[%c1, %c0_10, %c0_11] : memref<2x1280x49xbf16, #tpu.memory_space<vmem>>, vector<1x1280x49xbf16>
    %12 = vector.shape_cast %11 : vector<1x1280x49xbf16> to vector<1280x49xbf16>
    %c0_12 = arith.constant 0 : index
    %c0_13 = arith.constant 0 : index
    %13 = vector.load %arg2[%c0_12, %c0_13] : memref<1280x128xbf16, #tpu.memory_space<vmem>>, vector<1280x128xbf16>
    %cst_14 = arith.constant dense<0.000000e+00> : vector<49x128xf32>
    %14 = tpu.matmul %12, %13, %cst_14 {dimension_numbers = #tpu.dot_dimension_numbers<[0], [0], [1], [1], [0, 1, 1, 1], [], []>} : vector<1280x49xbf16>, vector<1280x128xbf16>, vector<49x128xf32> -> vector<49x128xf32>
    %cst_15 = arith.constant dense<0.000000e+00> : vector<128xf32>
    %15 = vector.multi_reduction <add>, %14, %cst_15 [0] : vector<49x128xf32> to vector<128xf32>
    %16 = vector.shape_cast %15 : vector<128xf32> to vector<1x128xf32>
    %cst_16 = arith.constant 0.0204081628 : f32
    %17 = vector.broadcast %cst_16 : f32 to vector<1x128xf32>
    %18 = arith.mulf %16, %17 : vector<1x128xf32>
    %c0_17 = arith.constant 0 : index
    %c0_18 = arith.constant 0 : index
    %19 = vector.load %arg3[%c0_17, %c0_18] : memref<1x128xf32, #tpu.memory_space<vmem>>, vector<1x128xf32>
    %20 = arith.addf %18, %19 : vector<1x128xf32>
    %c1_19 = arith.constant 1 : index
    %c0_20 = arith.constant 0 : index
    %21 = vector.load %arg4[%c1_19, %c0_20] : memref<2x128xf32, #tpu.memory_space<vmem>>, vector<1x128xf32>
    tpu.vector_store %arg4[%c1_19, %c0_20], %20 {strides = array<i32>} : memref<2x128xf32, #tpu.memory_space<vmem>>, vector<1x128xf32>,
    return
  }
  func.func @transform_0(%arg0: i32) -> (i32, i32, i32) {
    %c0_i32 = arith.constant 0 : i32
    %c0_i32_0 = arith.constant 0 : i32
    %c0_i32_1 = arith.constant 0 : i32
    return %arg0, %c0_i32, %c0_i32_0 : i32, i32, i32
  }
  func.func @transform_1(%arg0: i32) -> (i32, i32) {
    %c0_i32 = arith.constant 0 : i32
    %c0_i32_0 = arith.constant 0 : i32
    %c0_i32_1 = arith.constant 0 : i32
    return %c0_i32, %c0_i32_0 : i32, i32
  }
  func.func @transform_2(%arg0: i32) -> (i32, i32) {
    %c0_i32 = arith.constant 0 : i32
    %c0_i32_0 = arith.constant 0 : i32
    %c0_i32_1 = arith.constant 0 : i32
    return %c0_i32, %c0_i32_0 : i32, i32
  }
  func.func @transform_3(%arg0: i32) -> (i32, i32) {
    %c0_i32 = arith.constant 0 : i32
    %c0_i32_0 = arith.constant 0 : i32
    return %arg0, %c0_i32 : i32, i32
  }
}

</mosaic_0001>

<llo_original>
// kernel: tpu_custom_call.1
$region0: #{tpu_custom_call.1}
  #allocation0 [shape = 'u32[]', space=smem, size = 0x4, offset = 0x4, fixed_abs, tag = 'smem constant byte address 0x4 - core index']
  #allocation1 [shape = 'u32[72,128]{1,0:T(1,128)}', space=vmem, size = 0x9000, scoped, tag = 'internal scratch']
  %s0 = inlined_call_operand.vmem [shape: bf16[2,1280,49], index: 0, kind: input, shape index: {}]
  %s1 = inlined_call_operand.vmem [shape: bf16[1280,128], index: 1, kind: input, shape index: {}]
  %s2 = inlined_call_operand.vmem [shape: f32[1,128], index: 2, kind: input, shape index: {}]
  %s3 = inlined_call_operand.hbm [shape: f32[2,128], index: 3, kind: output, shape index: {}]
  %s4 = sld [smem:[#allocation0]]
  $region22: #{tpu_custom_call.1} parent=0
    _
  %s6 = ssub.s32 1, %s4
  %s7 = scalar_select 0, %s6, %s4
  $region1: #{tpu_custom_call.1} parent=0
    #allocation2 [shape = 'u8[1024]{0}', space=vmem, size = 0x400, scoped, tag = 'output window, operand 0, single buffered']
    #allocation3 [shape = 's32[1]{0}', space=sflag, size = 0x4, scoped, tag = 'scoped memory for tpu_custom_call.1']
    %8 = vsyncpa [#allocation3], 0
    // Predicated region
    $region2: #{tpu_custom_call.1} parent=1 // pred_check
      _
    $region3: #{tpu_custom_call.1} parent=1 // pred_check_branch
      %10 = sbr.rel (0) target = $region5
    $region4: #{tpu_custom_call.1} parent=1 // pred_region
      _
    $region5: #{tpu_custom_call.1} parent=1 // pred_fallthru
      _
    // Predicated region
    $region6: #{tpu_custom_call.1} parent=1 // pred_check
      _
    $region7: #{tpu_custom_call.1} parent=1 // pred_check_branch
      %12 = sbr.rel (0) target = $region9
    $region8: #{tpu_custom_call.1} parent=1 // pred_region
      _
    $region9: #{tpu_custom_call.1} parent=1 // pred_fallthru
      _
    // Predicated region
    $region10: #{tpu_custom_call.1} parent=1 // pred_check
      _
    $region11: #{tpu_custom_call.1} parent=1 // pred_check_branch
      %14 = sbr.rel (0) target = $region13
    $region12: #{tpu_custom_call.1} parent=1 // pred_region
      _
    $region13: #{tpu_custom_call.1} parent=1 // pred_fallthru
      _
    %v15 = vld [vmem:[%s0] sm:$0xf]
    %v16 = vld [vmem:[%s0 + $0x4] sm:$0xf]
    %v17 = vld [vmem:[%s0 + $0x8] sm:$0xf]
    %v18 = vld [vmem:[%s0 + $0xc] sm:$0xf]
    %v19 = vld [vmem:[%s0 + $0x10] sm:$0xf]
    %v20 = vld [vmem:[%s0 + $0x14] sm:$0xf]
    %v21 = vld [vmem:[%s0 + $0x18] sm:$0xf]
    %v22 = vld [vmem:[%s0 + $0x1c] sm:$0xf]
    %v23 = vld [vmem:[%s0 + $0x20] sm:$0xf]
    %v24 = vld [vmem:[%s0 + $0x24] sm:$0xf]
    %v25 = vld [vmem:[%s0 + $0x28] sm:$0xf]
    %v26 = vld [vmem:[%s0 + $0x2c] sm:$0xf]
    %v27 = vld [vmem:[%s0 + $0x30] sm:$0xf]
    %v28 = vld [vmem:[%s0 + $0x34] sm:$0xf]
    %v29 = vld [vmem:[%s0 + $0x38] sm:$0xf]
    %v30 = vld [vmem:[%s0 + $0x3c] sm:$0xf]
    %v31 = vld [vmem:[%s0 + $0x40] sm:$0xf]
    %v32 = vld [vmem:[%s0 + $0x44] sm:$0xf]
    %v33 = vld [vmem:[%s0 + $0x48] sm:$0xf]
    %v34 = vld [vmem:[%s0 + $0x4c] sm:$0xf]
    %v35 = vld [vmem:[%s0 + $0x50] sm:$0xf]
    %v36 = vld [vmem:[%s0 + $0x54] sm:$0xf]
    %v37 = vld [vmem:[%s0 + $0x58] sm:$0xf]
    %v38 = vld [vmem:[%s0 + $0x5c] sm:$0xf]
    %v39 = vld [vmem:[%s0 + $0x60] sm:$0xf]
    %v40 = vld [vmem:[%s0 + $0x64] sm:$0xf]
    %v41 = vld [vmem:[%s0 + $0x68] sm:$0xf]
    %v42 = vld [vmem:[%s0 + $0x6c] sm:$0xf]
    %v43 = vld [vmem:[%s0 + $0x70] sm:$0xf]
    %v44 = vld [vmem:[%s0 + $0x74] sm:$0xf]
    %v45 = vld [vmem:[%s0 + $0x78] sm:$0xf]
    %v46 = vld [vmem:[%s0 + $0x7c] sm:$0xf]
    %v47 = vld [vmem:[%s0 + $0x80] sm:$0xf]
    %v48 = vld [vmem:[%s0 + $0x84] sm:$0xf]
    %v49 = vld [vmem:[%s0 + $0x88] sm:$0xf]
    %v50 = vld [vmem:[%s0 + $0x8c] sm:$0xf]
    %v51 = vld [vmem:[%s0 + $0x90] sm:$0xf]
    %v52 = vld [vmem:[%s0 + $0x94] sm:$0xf]
    %v53 = vld [vmem:[%s0 + $0x98] sm:$0xf]
    %v54 = vld [vmem:[%s0 + $0x9c] sm:$0xf]
    %v55 = vld [vmem:[%s0 + $0xa0] sm:$0xf]
    %v56 = vld [vmem:[%s0 + $0xa4] sm:$0xf]
    %v57 = vld [vmem:[%s0 + $0xa8] sm:$0xf]
    %v58 = vld [vmem:[%s0 + $0xac] sm:$0xf]
    %v59 = vld [vmem:[%s0 + $0xb0] sm:$0xf]
    %v60 = vld [vmem:[%s0 + $0xb4] sm:$0xf]
    %v61 = vld [vmem:[%s0 + $0xb8] sm:$0xf]
    %v62 = vld [vmem:[%s0 + $0xbc] sm:$0xf]
    %v63 = vld [vmem:[%s0 + $0xc0] sm:$0xf]
    %v64 = vld [vmem:[%s0 + $0xc4] sm:$0xf]
    %v65 = vld [vmem:[%s0 + $0xc8] sm:$0xf]
    %v66 = vld [vmem:[%s0 + $0xcc] sm:$0xf]
    %v67 = vld [vmem:[%s0 + $0xd0] sm:$0xf]
    %v68 = vld [vmem:[%s0 + $0xd4] sm:$0xf]
    %v69 = vld [vmem:[%s0 + $0xd8] sm:$0xf]
    %v70 = vld [vmem:[%s0 + $0xdc] sm:$0xf]
    %v71 = vld [vmem:[%s0 + $0xe0] sm:$0xf]
    %v72 = vld [vmem:[%s0 + $0xe4] sm:$0xf]
    %v73 = vld [vmem:[%s0 + $0xe8] sm:$0xf]
    %v74 = vld [vmem:[%s0 + $0xec] sm:$0xf]
    %v75 = vld [vmem:[%s0 + $0xf0] sm:$0xf]
    %v76 = vld [vmem:[%s0 + $0xf4] sm:$0xf]
    %v77 = vld [vmem:[%s0 + $0xf8] sm:$0xf]
    %v78 = vld [vmem:[%s0 + $0xfc] sm:$0xf]
    %v79 = vld [vmem:[%s0 + $0x100] sm:$0xf]
    %v80 = vld [vmem:[%s0 + $0x104] sm:$0xf]
    %v81 = vld [vmem:[%s0 + $0x108] sm:$0xf]
    %v82 = vld [vmem:[%s0 + $0x10c] sm:$0xf]
    %v83 = vld [vmem:[%s0 + $0x110] sm:$0xf]
    %v84 = vld [vmem:[%s0 + $0x114] sm:$0xf]
    %v85 = vld [vmem:[%s0 + $0x118] sm:$0xf]
    %v86 = vld [vmem:[%s0 + $0x11c] sm:$0xf]
    %v87 = vld [vmem:[%s0 + $0x120] sm:$0xf]
    %v88 = vld [vmem:[%s0 + $0x124] sm:$0xf]
    %v89 = vld [vmem:[%s0 + $0x128] sm:$0xf]
    %v90 = vld [vmem:[%s0 + $0x12c] sm:$0xf]
    %v91 = vld [vmem:[%s0 + $0x130] sm:$0xf]
    %v92 = vld [vmem:[%s0 + $0x134] sm:$0xf]
    %v93 = vld [vmem:[%s0 + $0x138] sm:$0xf]
    %v94 = vld [vmem:[%s0 + $0x13c] sm:$0xf]
    %v95 = vld [vmem:[%s0 + $0x140] sm:$0xf]
    %v96 = vld [vmem:[%s0 + $0x144] sm:$0xf]
    %v97 = vld [vmem:[%s0 + $0x148] sm:$0xf]
    %v98 = vld [vmem:[%s0 + $0x14c] sm:$0xf]
    %v99 = vld [vmem:[%s0 + $0x150] sm:$0xf]
    %v100 = vld [vmem:[%s0 + $0x154] sm:$0xf]
    %v101 = vld [vmem:[%s0 + $0x158] sm:$0xf]
    %v102 = vld [vmem:[%s0 + $0x15c] sm:$0xf]
    %v103 = vld [vmem:[%s0 + $0x160] sm:$0xf]
    %v104 = vld [vmem:[%s0 + $0x164] sm:$0xf]
    %v105 = vld [vmem:[%s0 + $0x168] sm:$0xf]
    %v106 = vld [vmem:[%s0 + $0x16c] sm:$0xf]
    %v107 = vld [vmem:[%s0 + $0x170] sm:$0xf]
    %v108 = vld [vmem:[%s0 + $0x174] sm:$0xf]
    %v109 = vld [vmem:[%s0 + $0x178] sm:$0xf]
    %v110 = vld [vmem:[%s0 + $0x17c] sm:$0xf]
    %v111 = vld [vmem:[%s0 + $0x180] sm:$0xf]
    %v112 = vld [vmem:[%s0 + $0x184] sm:$0xf]
    %v113 = vld [vmem:[%s0 + $0x188] sm:$0xf]
    %v114 = vld [vmem:[%s0 + $0x18c] sm:$0xf]
    %v115 = vld [vmem:[%s0 + $0x190] sm:$0xf]
    %v116 = vld [vmem:[%s0 + $0x194] sm:$0xf]
    %v117 = vld [vmem:[%s0 + $0x198] sm:$0xf]
    %v118 = vld [vmem:[%s0 + $0x19c] sm:$0xf]
    %v119 = vld [vmem:[%s0 + $0x1a0] sm:$0xf]
    %v120 = vld [vmem:[%s0 + $0x1a4] sm:$0xf]
    %v121 = vld [vmem:[%s0 + $0x1a8] sm:$0xf]
    %v122 = vld [vmem:[%s0 + $0x1ac] sm:$0xf]
    %v123 = vld [vmem:[%s0 + $0x1b0] sm:$0xf]
    %v124 = vld [vmem:[%s0 + $0x1b4] sm:$0xf]
    %v125 = vld [vmem:[%s0 + $0x1b8] sm:$0xf]
    %v126 = vld [vmem:[%s0 + $0x1bc] sm:$0xf]
    %v127 = vld [vmem:[%s0 + $0x1c0] sm:$0xf]
    %v128 = vld [vmem:[%s0 + $0x1c4] sm:$0xf]
    %v129 = vld [vmem:[%s0 + $0x1c8] sm:$0xf]
    %v130 = vld [vmem:[%s0 + $0x1cc] sm:$0xf]
    %v131 = vld [vmem:[%s0 + $0x1d0] sm:$0xf]
    %v132 = vld [vmem:[%s0 + $0x1d4] sm:$0xf]
    %v133 = vld [vmem:[%s0 + $0x1d8] sm:$0xf]
    %v134 = vld [vmem:[%s0 + $0x1dc] sm:$0xf]
    %v135 = vld [vmem:[%s0 + $0x1e0] sm:$0xf]
    %v136 = vld [vmem:[%s0 + $0x1e4] sm:$0xf]
    %v137 = vld [vmem:[%s0 + $0x1e8] sm:$0xf]
    %v138 = vld [vmem:[%s0 + $0x1ec] sm:$0xf]
    %v139 = vld [vmem:[%s0 + $0x1f0] sm:$0xf]
    %v140 = vld [vmem:[%s0 + $0x1f4] sm:$0xf]
    %v141 = vld [vmem:[%s0 + $0x1f8] sm:$0xf]
    %v142 = vld [vmem:[%s0 + $0x1fc] sm:$0xf]
    %v143 = vld [vmem:[%s0 + $0x200] sm:$0xf]
    %v144 = vld [vmem:[%s0 + $0x204] sm:$0xf]
    %v145 = vld [vmem:[%s0 + $0x208] sm:$0xf]
    %v146 = vld [vmem:[%s0 + $0x20c] sm:$0xf]
    %v147 = vld [vmem:[%s0 + $0x210] sm:$0xf]
    %v148 = vld [vmem:[%s0 + $0x214] sm:$0xf]
    %v149 = vld [vmem:[%s0 + $0x218] sm:$0xf]
    %v150 = vld [vmem:[%s0 + $0x21c] sm:$0xf]
    %v151 = vld [vmem:[%s0 + $0x220] sm:$0xf]
    %v152 = vld [vmem:[%s0 + $0x224] sm:$0xf]
    %v153 = vld [vmem:[%s0 + $0x228] sm:$0xf]
    %v154 = vld [vmem:[%s0 + $0x22c] sm:$0xf]
    %v155 = vld [vmem:[%s0 + $0x230] sm:$0xf]
    %v156 = vld [vmem:[%s0 + $0x234] sm:$0xf]
    %v157 = vld [vmem:[%s0 + $0x238] sm:$0xf]
    %v158 = vld [vmem:[%s0 + $0x23c] sm:$0xf]
    %v159 = vld [vmem:[%s0 + $0x240] sm:$0xf]
    %v160 = vld [vmem:[%s0 + $0x244] sm:$0xf]
    %v161 = vld [vmem:[%s0 + $0x248] sm:$0xf]
    %v162 = vld [vmem:[%s0 + $0x24c] sm:$0xf]
    %v163 = vld [vmem:[%s0 + $0x250] sm:$0xf]
    %v164 = vld [vmem:[%s0 + $0x254] sm:$0xf]
    %v165 = vld [vmem:[%s0 + $0x258] sm:$0xf]
    %v166 = vld [vmem:[%s0 + $0x25c] sm:$0xf]
    %v167 = vld [vmem:[%s0 + $0x260] sm:$0xf]
    %v168 = vld [vmem:[%s0 + $0x264] sm:$0xf]
    %v169 = vld [vmem:[%s0 + $0x268] sm:$0xf]
    %v170 = vld [vmem:[%s0 + $0x26c] sm:$0xf]
    %v171 = vld [vmem:[%s0 + $0x270] sm:$0xf]
    %v172 = vld [vmem:[%s0 + $0x274] sm:$0xf]
    %v173 = vld [vmem:[%s0 + $0x278] sm:$0xf]
    %v174 = vld [vmem:[%s0 + $0x27c] sm:$0xf]
    %v175 = vld [vmem:[%s1] sm:$0xf]
    %v176 = vld [vmem:[%s1 + $0x4] sm:$0xf]
    %v177 = vld [vmem:[%s1 + $0x8] sm:$0xf]
    %v178 = vld [vmem:[%s1 + $0xc] sm:$0xf]
    %v179 = vld [vmem:[%s1 + $0x10] sm:$0xf]
    %v180 = vld [vmem:[%s1 + $0x14] sm:$0xf]
    %v181 = vld [vmem:[%s1 + $0x18] sm:$0xf]
    %v182 = vld [vmem:[%s1 + $0x1c] sm:$0xf]
    %v183 = vld [vmem:[%s1 + $0x20] sm:$0xf]
    %v184 = vld [vmem:[%s1 + $0x24] sm:$0xf]
    %v185 = vld [vmem:[%s1 + $0x28] sm:$0xf]
    %v186 = vld [vmem:[%s1 + $0x2c] sm:$0xf]
    %v187 = vld [vmem:[%s1 + $0x30] sm:$0xf]
    %v188 = vld [vmem:[%s1 + $0x34] sm:$0xf]
    %v189 = vld [vmem:[%s1 + $0x38] sm:$0xf]
    %v190 = vld [vmem:[%s1 + $0x3c] sm:$0xf]
    %v191 = vld [vmem:[%s1 + $0x40] sm:$0xf]
    %v192 = vld [vmem:[%s1 + $0x44] sm:$0xf]
    %v193 = vld [vmem:[%s1 + $0x48] sm:$0xf]
    %v194 = vld [vmem:[%s1 + $0x4c] sm:$0xf]
    %v195 = vld [vmem:[%s1 + $0x50] sm:$0xf]
    %v196 = vld [vmem:[%s1 + $0x54] sm:$0xf]
    %v197 = vld [vmem:[%s1 + $0x58] sm:$0xf]
    %v198 = vld [vmem:[%s1 + $0x5c] sm:$0xf]
    %v199 = vld [vmem:[%s1 + $0x60] sm:$0xf]
    %v200 = vld [vmem:[%s1 + $0x64] sm:$0xf]
    %v201 = vld [vmem:[%s1 + $0x68] sm:$0xf]
    %v202 = vld [vmem:[%s1 + $0x6c] sm:$0xf]
    %v203 = vld [vmem:[%s1 + $0x70] sm:$0xf]
    %v204 = vld [vmem:[%s1 + $0x74] sm:$0xf]
    %v205 = vld [vmem:[%s1 + $0x78] sm:$0xf]
    %v206 = vld [vmem:[%s1 + $0x7c] sm:$0xf]
    %v207 = vld [vmem:[%s1 + $0x80] sm:$0xf]
    %v208 = vld [vmem:[%s1 + $0x84] sm:$0xf]
    %v209 = vld [vmem:[%s1 + $0x88] sm:$0xf]
    %v210 = vld [vmem:[%s1 + $0x8c] sm:$0xf]
    %v211 = vld [vmem:[%s1 + $0x90] sm:$0xf]
    %v212 = vld [vmem:[%s1 + $0x94] sm:$0xf]
    %v213 = vld [vmem:[%s1 + $0x98] sm:$0xf]
    %v214 = vld [vmem:[%s1 + $0x9c] sm:$0xf]
    %v215 = vld [vmem:[%s1 + $0xa0] sm:$0xf]
    %v216 = vld [vmem:[%s1 + $0xa4] sm:$0xf]
    %v217 = vld [vmem:[%s1 + $0xa8] sm:$0xf]
    %v218 = vld [vmem:[%s1 + $0xac] sm:$0xf]
    %v219 = vld [vmem:[%s1 + $0xb0] sm:$0xf]
    %v220 = vld [vmem:[%s1 + $0xb4] sm:$0xf]
    %v221 = vld [vmem:[%s1 + $0xb8] sm:$0xf]
    %v222 = vld [vmem:[%s1 + $0xbc] sm:$0xf]
    %v223 = vld [vmem:[%s1 + $0xc0] sm:$0xf]
    %v224 = vld [vmem:[%s1 + $0xc4] sm:$0xf]
    %v225 = vld [vmem:[%s1 + $0xc8] sm:$0xf]
    %v226 = vld [vmem:[%s1 + $0xcc] sm:$0xf]
    %v227 = vld [vmem:[%s1 + $0xd0] sm:$0xf]
    %v228 = vld [vmem:[%s1 + $0xd4] sm:$0xf]
    %v229 = vld [vmem:[%s1 + $0xd8] sm:$0xf]
    %v230 = vld [vmem:[%s1 + $0xdc] sm:$0xf]
    %v231 = vld [vmem:[%s1 + $0xe0] sm:$0xf]
    %v232 = vld [vmem:[%s1 + $0xe4] sm:$0xf]
    %v233 = vld [vmem:[%s1 + $0xe8] sm:$0xf]
    %v234 = vld [vmem:[%s1 + $0xec] sm:$0xf]
    %v235 = vld [vmem:[%s1 + $0xf0] sm:$0xf]
    %v236 = vld [vmem:[%s1 + $0xf4] sm:$0xf]
    %v237 = vld [vmem:[%s1 + $0xf8] sm:$0xf]
    %v238 = vld [vmem:[%s1 + $0xfc] sm:$0xf]
    %v239 = vld [vmem:[%s1 + $0x100] sm:$0xf]
    %v240 = vld [vmem:[%s1 + $0x104] sm:$0xf]
    %v241 = vld [vmem:[%s1 + $0x108] sm:$0xf]
    %v242 = vld [vmem:[%s1 + $0x10c] sm:$0xf]
    %v243 = vld [vmem:[%s1 + $0x110] sm:$0xf]
    %v244 = vld [vmem:[%s1 + $0x114] sm:$0xf]
    %v245 = vld [vmem:[%s1 + $0x118] sm:$0xf]
    %v246 = vld [vmem:[%s1 + $0x11c] sm:$0xf]
    %v247 = vld [vmem:[%s1 + $0x120] sm:$0xf]
    %v248 = vld [vmem:[%s1 + $0x124] sm:$0xf]
    %v249 = vld [vmem:[%s1 + $0x128] sm:$0xf]
    %v250 = vld [vmem:[%s1 + $0x12c] sm:$0xf]
    %v251 = vld [vmem:[%s1 + $0x130] sm:$0xf]
    %v252 = vld [vmem:[%s1 + $0x134] sm:$0xf]
    %v253 = vld [vmem:[%s1 + $0x138] sm:$0xf]
    %v254 = vld [vmem:[%s1 + $0x13c] sm:$0xf]
    %v255 = vld [vmem:[%s1 + $0x140] sm:$0xf]
    %v256 = vld [vmem:[%s1 + $0x144] sm:$0xf]
    %v257 = vld [vmem:[%s1 + $0x148] sm:$0xf]
    %v258 = vld [vmem:[%s1 + $0x14c] sm:$0xf]
    %v259 = vld [vmem:[%s1 + $0x150] sm:$0xf]
    %v260 = vld [vmem:[%s1 + $0x154] sm:$0xf]
    %v261 = vld [vmem:[%s1 + $0x158] sm:$0xf]
    %v262 = vld [vmem:[%s1 + $0x15c] sm:$0xf]
    %v263 = vld [vmem:[%s1 + $0x160] sm:$0xf]
    %v264 = vld [vmem:[%s1 + $0x164] sm:$0xf]
    %v265 = vld [vmem:[%s1 + $0x168] sm:$0xf]
    %v266 = vld [vmem:[%s1 + $0x16c] sm:$0xf]
    %v267 = vld [vmem:[%s1 + $0x170] sm:$0xf]
    %v268 = vld [vmem:[%s1 + $0x174] sm:$0xf]
    %v269 = vld [vmem:[%s1 + $0x178] sm:$0xf]
    %v270 = vld [vmem:[%s1 + $0x17c] sm:$0xf]
    %v271 = vld [vmem:[%s1 + $0x180] sm:$0xf]
    %v272 = vld [vmem:[%s1 + $0x184] sm:$0xf]
    %v273 = vld [vmem:[%s1 + $0x188] sm:$0xf]
    %v274 = vld [vmem:[%s1 + $0x18c] sm:$0xf]
    %v275 = vld [vmem:[%s1 + $0x190] sm:$0xf]
    %v276 = vld [vmem:[%s1 + $0x194] sm:$0xf]
    %v277 = vld [vmem:[%s1 + $0x198] sm:$0xf]
    %v278 = vld [vmem:[%s1 + $0x19c] sm:$0xf]
    %v279 = vld [vmem:[%s1 + $0x1a0] sm:$0xf]
    %v280 = vld [vmem:[%s1 + $0x1a4] sm:$0xf]
    %v281 = vld [vmem:[%s1 + $0x1a8] sm:$0xf]
    %v282 = vld [vmem:[%s1 + $0x1ac] sm:$0xf]
    %v283 = vld [vmem:[%s1 + $0x1b0] sm:$0xf]
    %v284 = vld [vmem:[%s1 + $0x1b4] sm:$0xf]
    %v285 = vld [vmem:[%s1 + $0x1b8] sm:$0xf]
    %v286 = vld [vmem:[%s1 + $0x1bc] sm:$0xf]
    %v287 = vld [vmem:[%s1 + $0x1c0] sm:$0xf]
    %v288 = vld [vmem:[%s1 + $0x1c4] sm:$0xf]
    %v289 = vld [vmem:[%s1 + $0x1c8] sm:$0xf]
    %v290 = vld [vmem:[%s1 + $0x1cc] sm:$0xf]
    %v291 = vld [vmem:[%s1 + $0x1d0] sm:$0xf]
    %v292 = vld [vmem:[%s1 + $0x1d4] sm:$0xf]
    %v293 = vld [vmem:[%s1 + $0x1d8] sm:$0xf]
    %v294 = vld [vmem:[%s1 + $0x1dc] sm:$0xf]
    %v295 = vld [vmem:[%s1 + $0x1e0] sm:$0xf]
    %v296 = vld [vmem:[%s1 + $0x1e4] sm:$0xf]
    %v297 = vld [vmem:[%s1 + $0x1e8] sm:$0xf]
    %v298 = vld [vmem:[%s1 + $0x1ec] sm:$0xf]
    %v299 = vld [vmem:[%s1 + $0x1f0] sm:$0xf]
    %v300 = vld [vmem:[%s1 + $0x1f4] sm:$0xf]
    %v301 = vld [vmem:[%s1 + $0x1f8] sm:$0xf]
    %v302 = vld [vmem:[%s1 + $0x1fc] sm:$0xf]
    %v303 = vld [vmem:[%s1 + $0x200] sm:$0xf]
    %v304 = vld [vmem:[%s1 + $0x204] sm:$0xf]
    %v305 = vld [vmem:[%s1 + $0x208] sm:$0xf]
    %v306 = vld [vmem:[%s1 + $0x20c] sm:$0xf]
    %v307 = vld [vmem:[%s1 + $0x210] sm:$0xf]
    %v308 = vld [vmem:[%s1 + $0x214] sm:$0xf]
    %v309 = vld [vmem:[%s1 + $0x218] sm:$0xf]
    %v310 = vld [vmem:[%s1 + $0x21c] sm:$0xf]
    %v311 = vld [vmem:[%s1 + $0x220] sm:$0xf]
    %v312 = vld [vmem:[%s1 + $0x224] sm:$0xf]
    %v313 = vld [vmem:[%s1 + $0x228] sm:$0xf]
    %v314 = vld [vmem:[%s1 + $0x22c] sm:$0xf]
    %v315 = vld [vmem:[%s1 + $0x230] sm:$0xf]
    %v316 = vld [vmem:[%s1 + $0x234] sm:$0xf]
    %v317 = vld [vmem:[%s1 + $0x238] sm:$0xf]
    %v318 = vld [vmem:[%s1 + $0x23c] sm:$0xf]
    %v319 = vld [vmem:[%s1 + $0x240] sm:$0xf]
    %v320 = vld [vmem:[%s1 + $0x244] sm:$0xf]
    %v321 = vld [vmem:[%s1 + $0x248] sm:$0xf]
    %v322 = vld [vmem:[%s1 + $0x24c] sm:$0xf]
    %v323 = vld [vmem:[%s1 + $0x250] sm:$0xf]
    %v324 = vld [vmem:[%s1 + $0x254] sm:$0xf]
    %v325 = vld [vmem:[%s1 + $0x258] sm:$0xf]
    %v326 = vld [vmem:[%s1 + $0x25c] sm:$0xf]
    %v327 = vld [vmem:[%s1 + $0x260] sm:$0xf]
    %v328 = vld [vmem:[%s1 + $0x264] sm:$0xf]
    %v329 = vld [vmem:[%s1 + $0x268] sm:$0xf]
    %v330 = vld [vmem:[%s1 + $0x26c] sm:$0xf]
    %v331 = vld [vmem:[%s1 + $0x270] sm:$0xf]
    %v332 = vld [vmem:[%s1 + $0x274] sm:$0xf]
    %v333 = vld [vmem:[%s1 + $0x278] sm:$0xf]
    %v334 = vld [vmem:[%s1 + $0x27c] sm:$0xf]
    %v495 = vunpack.c.l.b16 %v15
    %v496 = vunpack.c.l.b16 %v16
    %v497 = vunpack.c.l.b16 %v17
    %v498 = vunpack.c.l.b16 %v18
    %v499 = vunpack.c.l.b16 %v19
    %v500 = vunpack.c.l.b16 %v20
    %v501 = vunpack.c.l.b16 %v21
    %v502 = vunpack.c.l.b16 %v22
    %v503 = vunpack.c.l.b16 %v23
    %v504 = vunpack.c.l.b16 %v24
    %v505 = vunpack.c.l.b16 %v25
    %v506 = vunpack.c.l.b16 %v26
    %v507 = vunpack.c.l.b16 %v27
    %v508 = vunpack.c.l.b16 %v28
    %v509 = vunpack.c.l.b16 %v29
    %v510 = vunpack.c.l.b16 %v30
    %v511 = vunpack.c.l.b16 %v31
    %v512 = vunpack.c.l.b16 %v32
    %v513 = vunpack.c.l.b16 %v33
    %v514 = vunpack.c.l.b16 %v34
    %v515 = vunpack.c.l.b16 %v35
    %v516 = vunpack.c.l.b16 %v36
    %v517 = vunpack.c.l.b16 %v37
    %v518 = vunpack.c.l.b16 %v38
    %v519 = vunpack.c.l.b16 %v39
    %v520 = vunpack.c.l.b16 %v40
    %v521 = vunpack.c.l.b16 %v41
    %v522 = vunpack.c.l.b16 %v42
    %v523 = vunpack.c.l.b16 %v43
    %v524 = vunpack.c.l.b16 %v44
    %v525 = vunpack.c.l.b16 %v45
    %v526 = vunpack.c.l.b16 %v46
    %v527 = vunpack.c.l.b16 %v47
    %v528 = vunpack.c.l.b16 %v48
    %v529 = vunpack.c.l.b16 %v49
    %v530 = vunpack.c.l.b16 %v50
    %v531 = vunpack.c.l.b16 %v51
    %v532 = vunpack.c.l.b16 %v52
    %v533 = vunpack.c.l.b16 %v53
    %v534 = vunpack.c.l.b16 %v54
    %v535 = vunpack.c.l.b16 %v55
    %v536 = vunpack.c.l.b16 %v56
    %v537 = vunpack.c.l.b16 %v57
    %v538 = vunpack.c.l.b16 %v58
    %v539 = vunpack.c.l.b16 %v59
    %v540 = vunpack.c.l.b16 %v60
    %v541 = vunpack.c.l.b16 %v61
    %v542 = vunpack.c.l.b16 %v62
    %v543 = vunpack.c.l.b16 %v63
    %v544 = vunpack.c.l.b16 %v64
    %v545 = vunpack.c.l.b16 %v65
    %v546 = vunpack.c.l.b16 %v66
    %v547 = vunpack.c.l.b16 %v67
    %v548 = vunpack.c.l.b16 %v68
    %v549 = vunpack.c.l.b16 %v69
    %v550 = vunpack.c.l.b16 %v70
    %v551 = vunpack.c.l.b16 %v71
    %v552 = vunpack.c.l.b16 %v72
    %v553 = vunpack.c.l.b16 %v73
    %v554 = vunpack.c.l.b16 %v74
    %v555 = vunpack.c.l.b16 %v75
    %v556 = vunpack.c.l.b16 %v76
    %v557 = vunpack.c.l.b16 %v77
    %v558 = vunpack.c.l.b16 %v78
    %v559 = vunpack.c.l.b16 %v79
    %v560 = vunpack.c.l.b16 %v80
    %v561 = vunpack.c.l.b16 %v81
    %v562 = vunpack.c.l.b16 %v82
    %v563 = vunpack.c.l.b16 %v83
    %v564 = vunpack.c.l.b16 %v84
    %v565 = vunpack.c.l.b16 %v85
    %v566 = vunpack.c.l.b16 %v86
    %v567 = vunpack.c.l.b16 %v87
    %v568 = vunpack.c.l.b16 %v88
    %v569 = vunpack.c.l.b16 %v89
    %v570 = vunpack.c.l.b16 %v90
    %v571 = vunpack.c.l.b16 %v91
    %v572 = vunpack.c.l.b16 %v92
    %v573 = vunpack.c.l.b16 %v93
    %v574 = vunpack.c.l.b16 %v94
    %v575 = vunpack.c.l.b16 %v95
    %v576 = vunpack.c.l.b16 %v96
    %v577 = vunpack.c.l.b16 %v97
    %v578 = vunpack.c.l.b16 %v98
    %v579 = vunpack.c.l.b16 %v99
    %v580 = vunpack.c.l.b16 %v100
    %v581 = vunpack.c.l.b16 %v101
    %v582 = vunpack.c.l.b16 %v102
    %v583 = vunpack.c.l.b16 %v103
    %v584 = vunpack.c.l.b16 %v104
    %v585 = vunpack.c.l.b16 %v105
    %v586 = vunpack.c.l.b16 %v106
    %v587 = vunpack.c.l.b16 %v107
    %v588 = vunpack.c.l.b16 %v108
    %v589 = vunpack.c.l.b16 %v109
    %v590 = vunpack.c.l.b16 %v110
    %v591 = vunpack.c.l.b16 %v111
    %v592 = vunpack.c.l.b16 %v112
    %v593 = vunpack.c.l.b16 %v113
    %v594 = vunpack.c.l.b16 %v114
    %v595 = vunpack.c.l.b16 %v115
    %v596 = vunpack.c.l.b16 %v116
    %v597 = vunpack.c.l.b16 %v117
    %v598 = vunpack.c.l.b16 %v118
    %v599 = vunpack.c.l.b16 %v119
    %v600 = vunpack.c.l.b16 %v120
    %v601 = vunpack.c.l.b16 %v121
    %v602 = vunpack.c.l.b16 %v122
    %v603 = vunpack.c.l.b16 %v123
    %v604 = vunpack.c.l.b16 %v124
    %v605 = vunpack.c.l.b16 %v125
    %v606 = vunpack.c.l.b16 %v126
    %v607 = vunpack.c.l.b16 %v127
    %v608 = vunpack.c.l.b16 %v128
    %v609 = vunpack.c.l.b16 %v129
    %v610 = vunpack.c.l.b16 %v130
    %v611 = vunpack.c.l.b16 %v131
    %v612 = vunpack.c.l.b16 %v132
    %v613 = vunpack.c.l.b16 %v133
    %v614 = vunpack.c.l.b16 %v134
    %v615 = vunpack.c.l.b16 %v135
    %v616 = vunpack.c.l.b16 %v136
    %v617 = vunpack.c.l.b16 %v137
    %v618 = vunpack.c.l.b16 %v138
    %v619 = vunpack.c.l.b16 %v139
    %v620 = vunpack.c.l.b16 %v140
    %v621 = vunpack.c.l.b16 %v141
    %v622 = vunpack.c.l.b16 %v142
    %v623 = vunpack.c.l.b16 %v143
    %v624 = vunpack.c.l.b16 %v144
    %v625 = vunpack.c.l.b16 %v145
    %v626 = vunpack.c.l.b16 %v146
    %v627 = vunpack.c.l.b16 %v147
    %v628 = vunpack.c.l.b16 %v148
    %v629 = vunpack.c.l.b16 %v149
    %v630 = vunpack.c.l.b16 %v150
    %v631 = vunpack.c.l.b16 %v151
    %v632 = vunpack.c.l.b16 %v152
    %v633 = vunpack.c.l.b16 %v153
    %v634 = vunpack.c.l.b16 %v154
    %v635 = vunpack.c.l.b16 %v155
    %v636 = vunpack.c.l.b16 %v156
    %v637 = vunpack.c.l.b16 %v157
    %v638 = vunpack.c.l.b16 %v158
    %v639 = vunpack.c.l.b16 %v159
    %v640 = vunpack.c.l.b16 %v160
    %v641 = vunpack.c.l.b16 %v161
    %v642 = vunpack.c.l.b16 %v162
    %v643 = vunpack.c.l.b16 %v163
    %v644 = vunpack.c.l.b16 %v164
    %v645 = vunpack.c.l.b16 %v165
    %v646 = vunpack.c.l.b16 %v166
    %v647 = vunpack.c.l.b16 %v167
    %v648 = vunpack.c.l.b16 %v168
    %v649 = vunpack.c.l.b16 %v169
    %v650 = vunpack.c.l.b16 %v170
    %v651 = vunpack.c.l.b16 %v171
    %v652 = vunpack.c.l.b16 %v172
    %v653 = vunpack.c.l.b16 %v173
    %v654 = vunpack.c.l.b16 %v174
    %v655 = vpack.c.b16 %v496, %v495
    %v656 = vpack.c.b16 %v498, %v497
    %v657 = vpack.c.b16 %v500, %v499
    %v658 = vpack.c.b16 %v502, %v501
    %v659 = vpack.c.b16 %v504, %v503
    %v660 = vpack.c.b16 %v506, %v505
    %v661 = vpack.c.b16 %v508, %v507
    %v662 = vpack.c.b16 %v510, %v509
    %v663 = vpack.c.b16 %v512, %v511
    %v664 = vpack.c.b16 %v514, %v513
    %v665 = vpack.c.b16 %v516, %v515
    %v666 = vpack.c.b16 %v518, %v517
    %v667 = vpack.c.b16 %v520, %v519
    %v668 = vpack.c.b16 %v522, %v521
    %v669 = vpack.c.b16 %v524, %v523
    %v670 = vpack.c.b16 %v526, %v525
    %v671 = vpack.c.b16 %v528, %v527
    %v672 = vpack.c.b16 %v530, %v529
    %v673 = vpack.c.b16 %v532, %v531
    %v674 = vpack.c.b16 %v534, %v533
    %v675 = vpack.c.b16 %v536, %v535
    %v676 = vpack.c.b16 %v538, %v537
    %v677 = vpack.c.b16 %v540, %v539
    %v678 = vpack.c.b16 %v542, %v541
    %v679 = vpack.c.b16 %v544, %v543
    %v680 = vpack.c.b16 %v546, %v545
    %v681 = vpack.c.b16 %v548, %v547
    %v682 = vpack.c.b16 %v550, %v549
    %v683 = vpack.c.b16 %v552, %v551
    %v684 = vpack.c.b16 %v554, %v553
    %v685 = vpack.c.b16 %v556, %v555
    %v686 = vpack.c.b16 %v558, %v557
    %v687 = vpack.c.b16 %v560, %v559
    %v688 = vpack.c.b16 %v562, %v561
    %v689 = vpack.c.b16 %v564, %v563
    %v690 = vpack.c.b16 %v566, %v565
    %v691 = vpack.c.b16 %v568, %v567
    %v692 = vpack.c.b16 %v570, %v569
    %v693 = vpack.c.b16 %v572, %v571
    %v694 = vpack.c.b16 %v574, %v573
    %v695 = vpack.c.b16 %v576, %v575
    %v696 = vpack.c.b16 %v578, %v577
    %v697 = vpack.c.b16 %v580, %v579
    %v698 = vpack.c.b16 %v582, %v581
    %v699 = vpack.c.b16 %v584, %v583
    %v700 = vpack.c.b16 %v586, %v585
    %v701 = vpack.c.b16 %v588, %v587
    %v702 = vpack.c.b16 %v590, %v589
    %v703 = vpack.c.b16 %v592, %v591
    %v704 = vpack.c.b16 %v594, %v593
    %v705 = vpack.c.b16 %v596, %v595
    %v706 = vpack.c.b16 %v598, %v597
    %v707 = vpack.c.b16 %v600, %v599
    %v708 = vpack.c.b16 %v602, %v601
    %v709 = vpack.c.b16 %v604, %v603
    %v710 = vpack.c.b16 %v606, %v605
    %v711 = vpack.c.b16 %v608, %v607
    %v712 = vpack.c.b16 %v610, %v609
    %v713 = vpack.c.b16 %v612, %v611
    %v714 = vpack.c.b16 %v614, %v613
    %v715 = vpack.c.b16 %v616, %v615
    %v716 = vpack.c.b16 %v618, %v617
    %v717 = vpack.c.b16 %v620, %v619
    %v718 = vpack.c.b16 %v622, %v621
    %v719 = vpack.c.b16 %v624, %v623
    %v720 = vpack.c.b16 %v626, %v625
    %v721 = vpack.c.b16 %v628, %v627
    %v722 = vpack.c.b16 %v630, %v629
    %v723 = vpack.c.b16 %v632, %v631
    %v724 = vpack.c.b16 %v634, %v633
    %v725 = vpack.c.b16 %v636, %v635
    %v726 = vpack.c.b16 %v638, %v637
    %v727 = vpack.c.b16 %v640, %v639
    %v728 = vpack.c.b16 %v642, %v641
    %v729 = vpack.c.b16 %v644, %v643
    %v730 = vpack.c.b16 %v646, %v645
    %v731 = vpack.c.b16 %v648, %v647
    %v732 = vpack.c.b16 %v650, %v649
    %v733 = vpack.c.b16 %v652, %v651
    %v734 = vpack.c.b16 %v654, %v653
    %815 = vxpose.xlu0.c.b16.start [1/8] %v655, 128
    %816 = vxpose.xlu0.c.b16.cont [2/8] %v656, 128
    %817 = vxpose.xlu0.c.b16.cont [3/8] %v657, 128
    %818 = vxpose.xlu0.c.b16.cont [4/8] %v658, 128
    %819 = vxpose.xlu0.c.b16.cont [5/8] %v659, 128
    %820 = vxpose.xlu0.c.b16.cont [6/8] %v660, 128
    %821 = vxpose.xlu0.c.b16.cont [7/8] %v661, 128
    %822 = vxpose.xlu0.c.b16.end [8/8] %v662, 128
    %v823 = vpop.trf.xlu0
    %v824 = vpop.trf.xlu0
    %v825 = vpop.trf.xlu0
    %v826 = vpop.trf.xlu0
    %v827 = vpop.trf.xlu0
    %v828 = vpop.trf.xlu0
    %v829 = vpop.trf.xlu0
    %v830 = vpop.trf.xlu0
    %831 = vxpose.xlu0.c.b16.start [1/8] %v663, 128
    %832 = vxpose.xlu0.c.b16.cont [2/8] %v664, 128
    %833 = vxpose.xlu0.c.b16.cont [3/8] %v665, 128
    %834 = vxpose.xlu0.c.b16.cont [4/8] %v666, 128
    %835 = vxpose.xlu0.c.b16.cont [5/8] %v667, 128
    %836 = vxpose.xlu0.c.b16.cont [6/8] %v668, 128
    %837 = vxpose.xlu0.c.b16.cont [7/8] %v669, 128
    %838 = vxpose.xlu0.c.b16.end [8/8] %v670, 128
    %v839 = vpop.trf.xlu0
    %v840 = vpop.trf.xlu0
    %v841 = vpop.trf.xlu0
    %v842 = vpop.trf.xlu0
    %v843 = vpop.trf.xlu0
    %v844 = vpop.trf.xlu0
    %v845 = vpop.trf.xlu0
    %v846 = vpop.trf.xlu0
    %847 = vxpose.xlu0.c.b16.start [1/8] %v671, 128
    %848 = vxpose.xlu0.c.b16.cont [2/8] %v672, 128
    %849 = vxpose.xlu0.c.b16.cont [3/8] %v673, 128
    %850 = vxpose.xlu0.c.b16.cont [4/8] %v674, 128
    %851 = vxpose.xlu0.c.b16.cont [5/8] %v675, 128
    %852 = vxpose.xlu0.c.b16.cont [6/8] %v676, 128
    %853 = vxpose.xlu0.c.b16.cont [7/8] %v677, 128
    %854 = vxpose.xlu0.c.b16.end [8/8] %v678, 128
    %v855 = vpop.trf.xlu0
    %v856 = vpop.trf.xlu0
    %v857 = vpop.trf.xlu0
    %v858 = vpop.trf.xlu0
    %v859 = vpop.trf.xlu0
    %v860 = vpop.trf.xlu0
    %v861 = vpop.trf.xlu0
    %v862 = vpop.trf.xlu0
    %863 = vxpose.xlu0.c.b16.start [1/8] %v679, 128
    %864 = vxpose.xlu0.c.b16.cont [2/8] %v680, 128
    %865 = vxpose.xlu0.c.b16.cont [3/8] %v681, 128
    %866 = vxpose.xlu0.c.b16.cont [4/8] %v682, 128
    %867 = vxpose.xlu0.c.b16.cont [5/8] %v683, 128
    %868 = vxpose.xlu0.c.b16.cont [6/8] %v684, 128
    %869 = vxpose.xlu0.c.b16.cont [7/8] %v685, 128
    %870 = vxpose.xlu0.c.b16.end [8/8] %v686, 128
    %v871 = vpop.trf.xlu0
    %v872 = vpop.trf.xlu0
    %v873 = vpop.trf.xlu0
    %v874 = vpop.trf.xlu0
    %v875 = vpop.trf.xlu0
    %v876 = vpop.trf.xlu0
    %v877 = vpop.trf.xlu0
    %v878 = vpop.trf.xlu0
    %879 = vxpose.xlu0.c.b16.start [1/8] %v687, 128
    %880 = vxpose.xlu0.c.b16.cont [2/8] %v688, 128
    %881 = vxpose.xlu0.c.b16.cont [3/8] %v689, 128
    %882 = vxpose.xlu0.c.b16.cont [4/8] %v690, 128
    %883 = vxpose.xlu0.c.b16.cont [5/8] %v691, 128
    %884 = vxpose.xlu0.c.b16.cont [6/8] %v692, 128
    %885 = vxpose.xlu0.c.b16.cont [7/8] %v693, 128
    %886 = vxpose.xlu0.c.b16.end [8/8] %v694, 128
    %v887 = vpop.trf.xlu0
    %v888 = vpop.trf.xlu0
    %v889 = vpop.trf.xlu0
    %v890 = vpop.trf.xlu0
    %v891 = vpop.trf.xlu0
    %v892 = vpop.trf.xlu0
    %v893 = vpop.trf.xlu0
    %v894 = vpop.trf.xlu0
    %895 = vxpose.xlu0.c.b16.start [1/8] %v695, 128
    %896 = vxpose.xlu0.c.b16.cont [2/8] %v696, 128
    %897 = vxpose.xlu0.c.b16.cont [3/8] %v697, 128
    %898 = vxpose.xlu0.c.b16.cont [4/8] %v698, 128
    %899 = vxpose.xlu0.c.b16.cont [5/8] %v699, 128
    %900 = vxpose.xlu0.c.b16.cont [6/8] %v700, 128
    %901 = vxpose.xlu0.c.b16.cont [7/8] %v701, 128
    %902 = vxpose.xlu0.c.b16.end [8/8] %v702, 128
    %v903 = vpop.trf.xlu0
    %v904 = vpop.trf.xlu0
    %v905 = vpop.trf.xlu0
    %v906 = vpop.trf.xlu0
    %v907 = vpop.trf.xlu0
    %v908 = vpop.trf.xlu0
    %v909 = vpop.trf.xlu0
    %v910 = vpop.trf.xlu0
    %911 = vxpose.xlu0.c.b16.start [1/8] %v703, 128
    %912 = vxpose.xlu0.c.b16.cont [2/8] %v704, 128
    %913 = vxpose.xlu0.c.b16.cont [3/8] %v705, 128
    %914 = vxpose.xlu0.c.b16.cont [4/8] %v706, 128
    %915 = vxpose.xlu0.c.b16.cont [5/8] %v707, 128
    %916 = vxpose.xlu0.c.b16.cont [6/8] %v708, 128
    %917 = vxpose.xlu0.c.b16.cont [7/8] %v709, 128
    %918 = vxpose.xlu0.c.b16.end [8/8] %v710, 128
    %v919 = vpop.trf.xlu0
    %v920 = vpop.trf.xlu0
    %v921 = vpop.trf.xlu0
    %v922 = vpop.trf.xlu0
    %v923 = vpop.trf.xlu0
    %v924 = vpop.trf.xlu0
    %v925 = vpop.trf.xlu0
    %v926 = vpop.trf.xlu0
    %927 = vxpose.xlu0.c.b16.start [1/8] %v711, 128
    %928 = vxpose.xlu0.c.b16.cont [2/8] %v712, 128
    %929 = vxpose.xlu0.c.b16.cont [3/8] %v713, 128
    %930 = vxpose.xlu0.c.b16.cont [4/8] %v714, 128
    %931 = vxpose.xlu0.c.b16.cont [5/8] %v715, 128
    %932 = vxpose.xlu0.c.b16.cont [6/8] %v716, 128
    %933 = vxpose.xlu0.c.b16.cont [7/8] %v717, 128
    %934 = vxpose.xlu0.c.b16.end [8/8] %v718, 128
    %v935 = vpop.trf.xlu0
    %v936 = vpop.trf.xlu0
    %v937 = vpop.trf.xlu0
    %v938 = vpop.trf.xlu0
    %v939 = vpop.trf.xlu0
    %v940 = vpop.trf.xlu0
    %v941 = vpop.trf.xlu0
    %v942 = vpop.trf.xlu0
    %943 = vxpose.xlu0.c.b16.start [1/8] %v719, 128
    %944 = vxpose.xlu0.c.b16.cont [2/8] %v720, 128
    %945 = vxpose.xlu0.c.b16.cont [3/8] %v721, 128
    %946 = vxpose.xlu0.c.b16.cont [4/8] %v722, 128
    %947 = vxpose.xlu0.c.b16.cont [5/8] %v723, 128
    %948 = vxpose.xlu0.c.b16.cont [6/8] %v724, 128
    %949 = vxpose.xlu0.c.b16.cont [7/8] %v725, 128
    %950 = vxpose.xlu0.c.b16.end [8/8] %v726, 128
    %v951 = vpop.trf.xlu0
    %v952 = vpop.trf.xlu0
    %v953 = vpop.trf.xlu0
    %v954 = vpop.trf.xlu0
    %v955 = vpop.trf.xlu0
    %v956 = vpop.trf.xlu0
    %v957 = vpop.trf.xlu0
    %v958 = vpop.trf.xlu0
    %959 = vxpose.xlu0.c.b16.start [1/8] %v727, 128
    %960 = vxpose.xlu0.c.b16.cont [2/8] %v728, 128
    %961 = vxpose.xlu0.c.b16.cont [3/8] %v729, 128
    %962 = vxpose.xlu0.c.b16.cont [4/8] %v730, 128
    %963 = vxpose.xlu0.c.b16.cont [5/8] %v731, 128
    %964 = vxpose.xlu0.c.b16.cont [6/8] %v732, 128
    %965 = vxpose.xlu0.c.b16.cont [7/8] %v733, 128
    %966 = vxpose.xlu0.c.b16.end [8/8] %v734, 128
    %v967 = vpop.trf.xlu0
    %v968 = vpop.trf.xlu0
    %v969 = vpop.trf.xlu0
    %v970 = vpop.trf.xlu0
    %v971 = vpop.trf.xlu0
    %v972 = vpop.trf.xlu0
    %v973 = vpop.trf.xlu0
    %v974 = vpop.trf.xlu0
    %v1135 = vunpack.c.l.b16 %v175
    %v1136 = vunpack.c.l.b16 %v176
    %v1137 = vunpack.c.l.b16 %v177
    %v1138 = vunpack.c.l.b16 %v178
    %v1139 = vunpack.c.l.b16 %v179
    %v1140 = vunpack.c.l.b16 %v180
    %v1141 = vunpack.c.l.b16 %v181
    %v1142 = vunpack.c.l.b16 %v182
    %v1143 = vunpack.c.l.b16 %v183
    %v1144 = vunpack.c.l.b16 %v184
    %v1145 = vunpack.c.l.b16 %v185
    %v1146 = vunpack.c.l.b16 %v186
    %v1147 = vunpack.c.l.b16 %v187
    %v1148 = vunpack.c.l.b16 %v188
    %v1149 = vunpack.c.l.b16 %v189
    %v1150 = vunpack.c.l.b16 %v190
    %v1151 = vunpack.c.l.b16 %v191
    %v1152 = vunpack.c.l.b16 %v192
    %v1153 = vunpack.c.l.b16 %v193
    %v1154 = vunpack.c.l.b16 %v194
    %v1155 = vunpack.c.l.b16 %v195
    %v1156 = vunpack.c.l.b16 %v196
    %v1157 = vunpack.c.l.b16 %v197
    %v1158 = vunpack.c.l.b16 %v198
    %v1159 = vunpack.c.l.b16 %v199
    %v1160 = vunpack.c.l.b16 %v200
    %v1161 = vunpack.c.l.b16 %v201
    %v1162 = vunpack.c.l.b16 %v202
    %v1163 = vunpack.c.l.b16 %v203
    %v1164 = vunpack.c.l.b16 %v204
    %v1165 = vunpack.c.l.b16 %v205
    %v1166 = vunpack.c.l.b16 %v206
    %v1167 = vunpack.c.l.b16 %v207
    %v1168 = vunpack.c.l.b16 %v208
    %v1169 = vunpack.c.l.b16 %v209
    %v1170 = vunpack.c.l.b16 %v210
    %v1171 = vunpack.c.l.b16 %v211
    %v1172 = vunpack.c.l.b16 %v212
    %v1173 = vunpack.c.l.b16 %v213
    %v1174 = vunpack.c.l.b16 %v214
    %v1175 = vunpack.c.l.b16 %v215
    %v1176 = vunpack.c.l.b16 %v216
    %v1177 = vunpack.c.l.b16 %v217
    %v1178 = vunpack.c.l.b16 %v218
    %v1179 = vunpack.c.l.b16 %v219
    %v1180 = vunpack.c.l.b16 %v220
    %v1181 = vunpack.c.l.b16 %v221
    %v1182 = vunpack.c.l.b16 %v222
    %v1183 = vunpack.c.l.b16 %v223
    %v1184 = vunpack.c.l.b16 %v224
    %v1185 = vunpack.c.l.b16 %v225
    %v1186 = vunpack.c.l.b16 %v226
    %v1187 = vunpack.c.l.b16 %v227
    %v1188 = vunpack.c.l.b16 %v228
    %v1189 = vunpack.c.l.b16 %v229
    %v1190 = vunpack.c.l.b16 %v230
    %v1191 = vunpack.c.l.b16 %v231
    %v1192 = vunpack.c.l.b16 %v232
    %v1193 = vunpack.c.l.b16 %v233
    %v1194 = vunpack.c.l.b16 %v234
    %v1195 = vunpack.c.l.b16 %v235
    %v1196 = vunpack.c.l.b16 %v236
    %v1197 = vunpack.c.l.b16 %v237
    %v1198 = vunpack.c.l.b16 %v238
    %v1199 = vunpack.c.l.b16 %v239
    %v1200 = vunpack.c.l.b16 %v240
    %v1201 = vunpack.c.l.b16 %v241
    %v1202 = vunpack.c.l.b16 %v242
    %v1203 = vunpack.c.l.b16 %v243
    %v1204 = vunpack.c.l.b16 %v244
    %v1205 = vunpack.c.l.b16 %v245
    %v1206 = vunpack.c.l.b16 %v246
    %v1207 = vunpack.c.l.b16 %v247
    %v1208 = vunpack.c.l.b16 %v248
    %v1209 = vunpack.c.l.b16 %v249
    %v1210 = vunpack.c.l.b16 %v250
    %v1211 = vunpack.c.l.b16 %v251
    %v1212 = vunpack.c.l.b16 %v252
    %v1213 = vunpack.c.l.b16 %v253
    %v1214 = vunpack.c.l.b16 %v254
    %v1215 = vunpack.c.l.b16 %v255
    %v1216 = vunpack.c.l.b16 %v256
    %v1217 = vunpack.c.l.b16 %v257
    %v1218 = vunpack.c.l.b16 %v258
    %v1219 = vunpack.c.l.b16 %v259
    %v1220 = vunpack.c.l.b16 %v260
    %v1221 = vunpack.c.l.b16 %v261
    %v1222 = vunpack.c.l.b16 %v262
    %v1223 = vunpack.c.l.b16 %v263
    %v1224 = vunpack.c.l.b16 %v264
    %v1225 = vunpack.c.l.b16 %v265
    %v1226 = vunpack.c.l.b16 %v266
    %v1227 = vunpack.c.l.b16 %v267
    %v1228 = vunpack.c.l.b16 %v268
    %v1229 = vunpack.c.l.b16 %v269
    %v1230 = vunpack.c.l.b16 %v270
    %v1231 = vunpack.c.l.b16 %v271
    %v1232 = vunpack.c.l.b16 %v272
    %v1233 = vunpack.c.l.b16 %v273
    %v1234 = vunpack.c.l.b16 %v274
    %v1235 = vunpack.c.l.b16 %v275
    %v1236 = vunpack.c.l.b16 %v276
    %v1237 = vunpack.c.l.b16 %v277
    %v1238 = vunpack.c.l.b16 %v278
    %v1239 = vunpack.c.l.b16 %v279
    %v1240 = vunpack.c.l.b16 %v280
    %v1241 = vunpack.c.l.b16 %v281
    %v1242 = vunpack.c.l.b16 %v282
    %v1243 = vunpack.c.l.b16 %v283
    %v1244 = vunpack.c.l.b16 %v284
    %v1245 = vunpack.c.l.b16 %v285
    %v1246 = vunpack.c.l.b16 %v286
    %v1247 = vunpack.c.l.b16 %v287
    %v1248 = vunpack.c.l.b16 %v288
    %v1249 = vunpack.c.l.b16 %v289
    %v1250 = vunpack.c.l.b16 %v290
    %v1251 = vunpack.c.l.b16 %v291
    %v1252 = vunpack.c.l.b16 %v292
    %v1253 = vunpack.c.l.b16 %v293
    %v1254 = vunpack.c.l.b16 %v294
    %v1255 = vunpack.c.l.b16 %v295
    %v1256 = vunpack.c.l.b16 %v296
    %v1257 = vunpack.c.l.b16 %v297
    %v1258 = vunpack.c.l.b16 %v298
    %v1259 = vunpack.c.l.b16 %v299
    %v1260 = vunpack.c.l.b16 %v300
    %v1261 = vunpack.c.l.b16 %v301
    %v1262 = vunpack.c.l.b16 %v302
    %v1263 = vunpack.c.l.b16 %v303
    %v1264 = vunpack.c.l.b16 %v304
    %v1265 = vunpack.c.l.b16 %v305
    %v1266 = vunpack.c.l.b16 %v306
    %v1267 = vunpack.c.l.b16 %v307
    %v1268 = vunpack.c.l.b16 %v308
    %v1269 = vunpack.c.l.b16 %v309
    %v1270 = vunpack.c.l.b16 %v310
    %v1271 = vunpack.c.l.b16 %v311
    %v1272 = vunpack.c.l.b16 %v312
    %v1273 = vunpack.c.l.b16 %v313
    %v1274 = vunpack.c.l.b16 %v314
    %v1275 = vunpack.c.l.b16 %v315
    %v1276 = vunpack.c.l.b16 %v316
    %v1277 = vunpack.c.l.b16 %v317
    %v1278 = vunpack.c.l.b16 %v318
    %v1279 = vunpack.c.l.b16 %v319
    %v1280 = vunpack.c.l.b16 %v320
    %v1281 = vunpack.c.l.b16 %v321
    %v1282 = vunpack.c.l.b16 %v322
    %v1283 = vunpack.c.l.b16 %v323
    %v1284 = vunpack.c.l.b16 %v324
    %v1285 = vunpack.c.l.b16 %v325
    %v1286 = vunpack.c.l.b16 %v326
    %v1287 = vunpack.c.l.b16 %v327
    %v1288 = vunpack.c.l.b16 %v328
    %v1289 = vunpack.c.l.b16 %v329
    %v1290 = vunpack.c.l.b16 %v330
    %v1291 = vunpack.c.l.b16 %v331
    %v1292 = vunpack.c.l.b16 %v332
    %v1293 = vunpack.c.l.b16 %v333
    %v1294 = vunpack.c.l.b16 %v334
    %v1295 = vpack.c.b16 %v1136, %v1135
    %v1296 = vpack.c.b16 %v1138, %v1137
    %v1297 = vpack.c.b16 %v1140, %v1139
    %v1298 = vpack.c.b16 %v1142, %v1141
    %v1299 = vpack.c.b16 %v1144, %v1143
    %v1300 = vpack.c.b16 %v1146, %v1145
    %v1301 = vpack.c.b16 %v1148, %v1147
    %v1302 = vpack.c.b16 %v1150, %v1149
    %v1303 = vpack.c.b16 %v1152, %v1151
    %v1304 = vpack.c.b16 %v1154, %v1153
    %v1305 = vpack.c.b16 %v1156, %v1155
    %v1306 = vpack.c.b16 %v1158, %v1157
    %v1307 = vpack.c.b16 %v1160, %v1159
    %v1308 = vpack.c.b16 %v1162, %v1161
    %v1309 = vpack.c.b16 %v1164, %v1163
    %v1310 = vpack.c.b16 %v1166, %v1165
    %v1311 = vpack.c.b16 %v1168, %v1167
    %v1312 = vpack.c.b16 %v1170, %v1169
    %v1313 = vpack.c.b16 %v1172, %v1171
    %v1314 = vpack.c.b16 %v1174, %v1173
    %v1315 = vpack.c.b16 %v1176, %v1175
    %v1316 = vpack.c.b16 %v1178, %v1177
    %v1317 = vpack.c.b16 %v1180, %v1179
    %v1318 = vpack.c.b16 %v1182, %v1181
    %v1319 = vpack.c.b16 %v1184, %v1183
    %v1320 = vpack.c.b16 %v1186, %v1185
    %v1321 = vpack.c.b16 %v1188, %v1187
    %v1322 = vpack.c.b16 %v1190, %v1189
    %v1323 = vpack.c.b16 %v1192, %v1191
    %v1324 = vpack.c.b16 %v1194, %v1193
    %v1325 = vpack.c.b16 %v1196, %v1195
    %v1326 = vpack.c.b16 %v1198, %v1197
    %v1327 = vpack.c.b16 %v1200, %v1199
    %v1328 = vpack.c.b16 %v1202, %v1201
    %v1329 = vpack.c.b16 %v1204, %v1203
    %v1330 = vpack.c.b16 %v1206, %v1205
    %v1331 = vpack.c.b16 %v1208, %v1207
    %v1332 = vpack.c.b16 %v1210, %v1209
    %v1333 = vpack.c.b16 %v1212, %v1211
    %v1334 = vpack.c.b16 %v1214, %v1213
    %v1335 = vpack.c.b16 %v1216, %v1215
    %v1336 = vpack.c.b16 %v1218, %v1217
    %v1337 = vpack.c.b16 %v1220, %v1219
    %v1338 = vpack.c.b16 %v1222, %v1221
    %v1339 = vpack.c.b16 %v1224, %v1223
    %v1340 = vpack.c.b16 %v1226, %v1225
    %v1341 = vpack.c.b16 %v1228, %v1227
    %v1342 = vpack.c.b16 %v1230, %v1229
    %v1343 = vpack.c.b16 %v1232, %v1231
    %v1344 = vpack.c.b16 %v1234, %v1233
    %v1345 = vpack.c.b16 %v1236, %v1235
    %v1346 = vpack.c.b16 %v1238, %v1237
    %v1347 = vpack.c.b16 %v1240, %v1239
    %v1348 = vpack.c.b16 %v1242, %v1241
    %v1349 = vpack.c.b16 %v1244, %v1243
    %v1350 = vpack.c.b16 %v1246, %v1245
    %v1351 = vpack.c.b16 %v1248, %v1247
    %v1352 = vpack.c.b16 %v1250, %v1249
    %v1353 = vpack.c.b16 %v1252, %v1251
    %v1354 = vpack.c.b16 %v1254, %v1253
    %v1355 = vpack.c.b16 %v1256, %v1255
    %v1356 = vpack.c.b16 %v1258, %v1257
    %v1357 = vpack.c.b16 %v1260, %v1259
    %v1358 = vpack.c.b16 %v1262, %v1261
    %v1359 = vpack.c.b16 %v1264, %v1263
    %v1360 = vpack.c.b16 %v1266, %v1265
    %v1361 = vpack.c.b16 %v1268, %v1267
    %v1362 = vpack.c.b16 %v1270, %v1269
    %v1363 = vpack.c.b16 %v1272, %v1271
    %v1364 = vpack.c.b16 %v1274, %v1273
    %v1365 = vpack.c.b16 %v1276, %v1275
    %v1366 = vpack.c.b16 %v1278, %v1277
    %v1367 = vpack.c.b16 %v1280, %v1279
    %v1368 = vpack.c.b16 %v1282, %v1281
    %v1369 = vpack.c.b16 %v1284, %v1283
    %v1370 = vpack.c.b16 %v1286, %v1285
    %v1371 = vpack.c.b16 %v1288, %v1287
    %v1372 = vpack.c.b16 %v1290, %v1289
    %v1373 = vpack.c.b16 %v1292, %v1291
    %v1374 = vpack.c.b16 %v1294, %v1293
    %1455 = vmatpush.bf16.msra.mxu0 %v1302
    %1456 = vmatpush.bf16.msra.mxu0 %v1301
    %1457 = vmatpush.bf16.msra.mxu0 %v1300
    %1458 = vmatpush.bf16.msra.mxu0 %v1299
    %1459 = vmatpush.bf16.msra.mxu0 %v1298
    %1460 = vmatpush.bf16.msra.mxu0 %v1297
    %1461 = vmatpush.bf16.msra.mxu0 %v1296
    %1462 = vmatpush.bf16.msra.mxu0 %v1295
    %1463 = vmatmul.bf16.gmra.mxu0 %v823
    %v1464 = vpop.f32.mrf.mxu0
    %v1465 = vadd.f32 0.0, %v1464
    %v1466 = vpop.f32.mrf.mxu0
    %v1467 = vadd.f32 0.0, %v1466
    %1468 = vmatmul.bf16.gmra.mxu0 %v824
    %v1469 = vpop.f32.mrf.mxu0
    %v1470 = vadd.f32 0.0, %v1469
    %v1471 = vpop.f32.mrf.mxu0
    %v1472 = vadd.f32 0.0, %v1471
    %1473 = vmatmul.bf16.gmra.mxu0 %v825
    %v1474 = vpop.f32.mrf.mxu0
    %v1475 = vadd.f32 0.0, %v1474
    %v1476 = vpop.f32.mrf.mxu0
    %v1477 = vadd.f32 0.0, %v1476
    %1478 = vmatmul.bf16.gmra.mxu0 %v826
    %v1479 = vpop.f32.mrf.mxu0
    %v1480 = vadd.f32 0.0, %v1479
    %v1481 = vpop.f32.mrf.mxu0
    %1482 = vdwg.mxu0
    %1483 = vmatpush.bf16.msra.mxu0 %v1310
    %1484 = vmatpush.bf16.msra.mxu0 %v1309
    %1485 = vmatpush.bf16.msra.mxu0 %v1308
    %1486 = vmatpush.bf16.msra.mxu0 %v1307
    %1487 = vmatpush.bf16.msra.mxu0 %v1306
    %1488 = vmatpush.bf16.msra.mxu0 %v1305
    %1489 = vmatpush.bf16.msra.mxu0 %v1304
    %1490 = vmatpush.bf16.msra.mxu0 %v1303
    %1491 = vmatmul.bf16.gmra.mxu0 %v839
    %v1492 = vpop.f32.mrf.mxu0
    %v1493 = vadd.f32 %v1465, %v1492
    %v1494 = vpop.f32.mrf.mxu0
    %v1495 = vadd.f32 %v1467, %v1494
    %1496 = vmatmul.bf16.gmra.mxu0 %v840
    %v1497 = vpop.f32.mrf.mxu0
    %v1498 = vadd.f32 %v1470, %v1497
    %v1499 = vpop.f32.mrf.mxu0
    %v1500 = vadd.f32 %v1472, %v1499
    %1501 = vmatmul.bf16.gmra.mxu0 %v841
    %v1502 = vpop.f32.mrf.mxu0
    %v1503 = vadd.f32 %v1475, %v1502
    %v1504 = vpop.f32.mrf.mxu0
    %v1505 = vadd.f32 %v1477, %v1504
    %1506 = vmatmul.bf16.gmra.mxu0 %v842
    %v1507 = vpop.f32.mrf.mxu0
    %v1508 = vadd.f32 %v1480, %v1507
    %v1509 = vpop.f32.mrf.mxu0
    %1510 = vdwg.mxu0
    %1511 = vmatpush.bf16.msra.mxu0 %v1318
    %1512 = vmatpush.bf16.msra.mxu0 %v1317
    %1513 = vmatpush.bf16.msra.mxu0 %v1316
    %1514 = vmatpush.bf16.msra.mxu0 %v1315
    %1515 = vmatpush.bf16.msra.mxu0 %v1314
    %1516 = vmatpush.bf16.msra.mxu0 %v1313
    %1517 = vmatpush.bf16.msra.mxu0 %v1312
    %1518 = vmatpush.bf16.msra.mxu0 %v1311
    %1519 = vmatmul.bf16.gmra.mxu0 %v855
    %v1520 = vpop.f32.mrf.mxu0
    %v1521 = vadd.f32 %v1493, %v1520
    %v1522 = vpop.f32.mrf.mxu0
    %v1523 = vadd.f32 %v1495, %v1522
    %1524 = vmatmul.bf16.gmra.mxu0 %v856
    %v1525 = vpop.f32.mrf.mxu0
    %v1526 = vadd.f32 %v1498, %v1525
    %v1527 = vpop.f32.mrf.mxu0
    %v1528 = vadd.f32 %v1500, %v1527
    %1529 = vmatmul.bf16.gmra.mxu0 %v857
    %v1530 = vpop.f32.mrf.mxu0
    %v1531 = vadd.f32 %v1503, %v1530
    %v1532 = vpop.f32.mrf.mxu0
    %v1533 = vadd.f32 %v1505, %v1532
    %1534 = vmatmul.bf16.gmra.mxu0 %v858
    %v1535 = vpop.f32.mrf.mxu0
    %v1536 = vadd.f32 %v1508, %v1535
    %v1537 = vpop.f32.mrf.mxu0
    %1538 = vdwg.mxu0
    %1539 = vmatpush.bf16.msra.mxu0 %v1326
    %1540 = vmatpush.bf16.msra.mxu0 %v1325
    %1541 = vmatpush.bf16.msra.mxu0 %v1324
    %1542 = vmatpush.bf16.msra.mxu0 %v1323
    %1543 = vmatpush.bf16.msra.mxu0 %v1322
    %1544 = vmatpush.bf16.msra.mxu0 %v1321
    %1545 = vmatpush.bf16.msra.mxu0 %v1320
    %1546 = vmatpush.bf16.msra.mxu0 %v1319
    %1547 = vmatmul.bf16.gmra.mxu0 %v871
    %v1548 = vpop.f32.mrf.mxu0
    %v1549 = vadd.f32 %v1521, %v1548
    %v1550 = vpop.f32.mrf.mxu0
    %v1551 = vadd.f32 %v1523, %v1550
    %1552 = vmatmul.bf16.gmra.mxu0 %v872
    %v1553 = vpop.f32.mrf.mxu0
    %v1554 = vadd.f32 %v1526, %v1553
    %v1555 = vpop.f32.mrf.mxu0
    %v1556 = vadd.f32 %v1528, %v1555
    %1557 = vmatmul.bf16.gmra.mxu0 %v873
    %v1558 = vpop.f32.mrf.mxu0
    %v1559 = vadd.f32 %v1531, %v1558
    %v1560 = vpop.f32.mrf.mxu0
    %v1561 = vadd.f32 %v1533, %v1560
    %1562 = vmatmul.bf16.gmra.mxu0 %v874
    %v1563 = vpop.f32.mrf.mxu0
    %v1564 = vadd.f32 %v1536, %v1563
    %v1565 = vpop.f32.mrf.mxu0
    %1566 = vdwg.mxu0
    %1567 = vmatpush.bf16.msra.mxu0 %v1334
    %1568 = vmatpush.bf16.msra.mxu0 %v1333
    %1569 = vmatpush.bf16.msra.mxu0 %v1332
    %1570 = vmatpush.bf16.msra.mxu0 %v1331
    %1571 = vmatpush.bf16.msra.mxu0 %v1330
    %1572 = vmatpush.bf16.msra.mxu0 %v1329
    %1573 = vmatpush.bf16.msra.mxu0 %v1328
    %1574 = vmatpush.bf16.msra.mxu0 %v1327
    %1575 = vmatmul.bf16.gmra.mxu0 %v887
    %v1576 = vpop.f32.mrf.mxu0
    %v1577 = vadd.f32 %v1549, %v1576
    %v1578 = vpop.f32.mrf.mxu0
    %v1579 = vadd.f32 %v1551, %v1578
    %1580 = vmatmul.bf16.gmra.mxu0 %v888
    %v1581 = vpop.f32.mrf.mxu0
    %v1582 = vadd.f32 %v1554, %v1581
    %v1583 = vpop.f32.mrf.mxu0
    %v1584 = vadd.f32 %v1556, %v1583
    %1585 = vmatmul.bf16.gmra.mxu0 %v889
    %v1586 = vpop.f32.mrf.mxu0
    %v1587 = vadd.f32 %v1559, %v1586
    %v1588 = vpop.f32.mrf.mxu0
    %v1589 = vadd.f32 %v1561, %v1588
    %1590 = vmatmul.bf16.gmra.mxu0 %v890
    %v1591 = vpop.f32.mrf.mxu0
    %v1592 = vadd.f32 %v1564, %v1591
    %v1593 = vpop.f32.mrf.mxu0
    %1594 = vdwg.mxu0
    %1595 = vmatpush.bf16.msra.mxu0 %v1342
    %1596 = vmatpush.bf16.msra.mxu0 %v1341
    %1597 = vmatpush.bf16.msra.mxu0 %v1340
    %1598 = vmatpush.bf16.msra.mxu0 %v1339
    %1599 = vmatpush.bf16.msra.mxu0 %v1338
    %1600 = vmatpush.bf16.msra.mxu0 %v1337
    %1601 = vmatpush.bf16.msra.mxu0 %v1336
    %1602 = vmatpush.bf16.msra.mxu0 %v1335
    %1603 = vmatmul.bf16.gmra.mxu0 %v903
    %v1604 = vpop.f32.mrf.mxu0
    %v1605 = vadd.f32 %v1577, %v1604
    %v1606 = vpop.f32.mrf.mxu0
    %v1607 = vadd.f32 %v1579, %v1606
    %1608 = vmatmul.bf16.gmra.mxu0 %v904
    %v1609 = vpop.f32.mrf.mxu0
    %v1610 = vadd.f32 %v1582, %v1609
    %v1611 = vpop.f32.mrf.mxu0
    %v1612 = vadd.f32 %v1584, %v1611
    %1613 = vmatmul.bf16.gmra.mxu0 %v905
    %v1614 = vpop.f32.mrf.mxu0
    %v1615 = vadd.f32 %v1587, %v1614
    %v1616 = vpop.f32.mrf.mxu0
    %v1617 = vadd.f32 %v1589, %v1616
    %1618 = vmatmul.bf16.gmra.mxu0 %v906
    %v1619 = vpop.f32.mrf.mxu0
    %v1620 = vadd.f32 %v1592, %v1619
    %v1621 = vpop.f32.mrf.mxu0
    %1622 = vdwg.mxu0
    %1623 = vmatpush.bf16.msra.mxu0 %v1350
    %1624 = vmatpush.bf16.msra.mxu0 %v1349
    %1625 = vmatpush.bf16.msra.mxu0 %v1348
    %1626 = vmatpush.bf16.msra.mxu0 %v1347
    %1627 = vmatpush.bf16.msra.mxu0 %v1346
    %1628 = vmatpush.bf16.msra.mxu0 %v1345
    %1629 = vmatpush.bf16.msra.mxu0 %v1344
    %1630 = vmatpush.bf16.msra.mxu0 %v1343
    %1631 = vmatmul.bf16.gmra.mxu0 %v919
    %v1632 = vpop.f32.mrf.mxu0
    %v1633 = vadd.f32 %v1605, %v1632
    %v1634 = vpop.f32.mrf.mxu0
    %v1635 = vadd.f32 %v1607, %v1634
    %1636 = vmatmul.bf16.gmra.mxu0 %v920
    %v1637 = vpop.f32.mrf.mxu0
    %v1638 = vadd.f32 %v1610, %v1637
    %v1639 = vpop.f32.mrf.mxu0
    %v1640 = vadd.f32 %v1612, %v1639
    %1641 = vmatmul.bf16.gmra.mxu0 %v921
    %v1642 = vpop.f32.mrf.mxu0
    %v1643 = vadd.f32 %v1615, %v1642
    %v1644 = vpop.f32.mrf.mxu0
    %v1645 = vadd.f32 %v1617, %v1644
    %1646 = vmatmul.bf16.gmra.mxu0 %v922
    %v1647 = vpop.f32.mrf.mxu0
    %v1648 = vadd.f32 %v1620, %v1647
    %v1649 = vpop.f32.mrf.mxu0
    %1650 = vdwg.mxu0
    %1651 = vmatpush.bf16.msra.mxu0 %v1358
    %1652 = vmatpush.bf16.msra.mxu0 %v1357
    %1653 = vmatpush.bf16.msra.mxu0 %v1356
    %1654 = vmatpush.bf16.msra.mxu0 %v1355
    %1655 = vmatpush.bf16.msra.mxu0 %v1354
    %1656 = vmatpush.bf16.msra.mxu0 %v1353
    %1657 = vmatpush.bf16.msra.mxu0 %v1352
    %1658 = vmatpush.bf16.msra.mxu0 %v1351
    %1659 = vmatmul.bf16.gmra.mxu0 %v935
    %v1660 = vpop.f32.mrf.mxu0
    %v1661 = vadd.f32 %v1633, %v1660
    %v1662 = vpop.f32.mrf.mxu0
    %v1663 = vadd.f32 %v1635, %v1662
    %1664 = vmatmul.bf16.gmra.mxu0 %v936
    %v1665 = vpop.f32.mrf.mxu0
    %v1666 = vadd.f32 %v1638, %v1665
    %v1667 = vpop.f32.mrf.mxu0
    %v1668 = vadd.f32 %v1640, %v1667
    %1669 = vmatmul.bf16.gmra.mxu0 %v937
    %v1670 = vpop.f32.mrf.mxu0
    %v1671 = vadd.f32 %v1643, %v1670
    %v1672 = vpop.f32.mrf.mxu0
    %v1673 = vadd.f32 %v1645, %v1672
    %1674 = vmatmul.bf16.gmra.mxu0 %v938
    %v1675 = vpop.f32.mrf.mxu0
    %v1676 = vadd.f32 %v1648, %v1675
    %v1677 = vpop.f32.mrf.mxu0
    %1678 = vdwg.mxu0
    %1679 = vmatpush.bf16.msra.mxu0 %v1366
    %1680 = vmatpush.bf16.msra.mxu0 %v1365
    %1681 = vmatpush.bf16.msra.mxu0 %v1364
    %1682 = vmatpush.bf16.msra.mxu0 %v1363
    %1683 = vmatpush.bf16.msra.mxu0 %v1362
    %1684 = vmatpush.bf16.msra.mxu0 %v1361
    %1685 = vmatpush.bf16.msra.mxu0 %v1360
    %1686 = vmatpush.bf16.msra.mxu0 %v1359
    %1687 = vmatmul.bf16.gmra.mxu0 %v951
    %v1688 = vpop.f32.mrf.mxu0
    %v1689 = vadd.f32 %v1661, %v1688
    %v1690 = vpop.f32.mrf.mxu0
    %v1691 = vadd.f32 %v1663, %v1690
    %1692 = vmatmul.bf16.gmra.mxu0 %v952
    %v1693 = vpop.f32.mrf.mxu0
    %v1694 = vadd.f32 %v1666, %v1693
    %v1695 = vpop.f32.mrf.mxu0
    %v1696 = vadd.f32 %v1668, %v1695
    %1697 = vmatmul.bf16.gmra.mxu0 %v953
    %v1698 = vpop.f32.mrf.mxu0
    %v1699 = vadd.f32 %v1671, %v1698
    %v1700 = vpop.f32.mrf.mxu0
    %v1701 = vadd.f32 %v1673, %v1700
    %1702 = vmatmul.bf16.gmra.mxu0 %v954
    %v1703 = vpop.f32.mrf.mxu0
    %v1704 = vadd.f32 %v1676, %v1703
    %v1705 = vpop.f32.mrf.mxu0
    %1706 = vdwg.mxu0
    %1707 = vmatpush.bf16.msra.mxu0 %v1374
    %1708 = vmatpush.bf16.msra.mxu0 %v1373
    %1709 = vmatpush.bf16.msra.mxu0 %v1372
    %1710 = vmatpush.bf16.msra.mxu0 %v1371
    %1711 = vmatpush.bf16.msra.mxu0 %v1370
    %1712 = vmatpush.bf16.msra.mxu0 %v1369
    %1713 = vmatpush.bf16.msra.mxu0 %v1368
    %1714 = vmatpush.bf16.msra.mxu0 %v1367
    %1715 = vmatmul.bf16.gmra.mxu0 %v967
    %v1716 = vpop.f32.mrf.mxu0
    %v1717 = vadd.f32 %v1689, %v1716
    %v1718 = vpop.f32.mrf.mxu0
    %v1719 = vadd.f32 %v1691, %v1718
    %1720 = vmatmul.bf16.gmra.mxu0 %v968
    %v1721 = vpop.f32.mrf.mxu0
    %v1722 = vadd.f32 %v1694, %v1721
    %v1723 = vpop.f32.mrf.mxu0
    %v1724 = vadd.f32 %v1696, %v1723
    %1725 = vmatmul.bf16.gmra.mxu0 %v969
    %v1726 = vpop.f32.mrf.mxu0
    %v1727 = vadd.f32 %v1699, %v1726
    %v1728 = vpop.f32.mrf.mxu0
    %v1729 = vadd.f32 %v1701, %v1728
    %1730 = vmatmul.bf16.gmra.mxu0 %v970
    %v1731 = vpop.f32.mrf.mxu0
    %v1732 = vadd.f32 %v1704, %v1731
    %v1733 = vpop.f32.mrf.mxu0
    %1734 = vdwg.mxu0
    %v1735 = vadd.f32 %v1717, %v1719
    %v1736 = vadd.f32 %v1735, %v1722
    %v1737 = vadd.f32 %v1736, %v1724
    %v1738 = vadd.f32 %v1737, %v1727
    %v1739 = vadd.f32 %v1738, %v1729
    %vm1740 = vcmask 1040384
    %v1741 = vsel %vm1740, %v1732, 0.0
    %v1742 = vadd.f32 %v1739, %v1741
    %v1743 = vrot.slane %v1742, 4
    %v1744 = vadd.f32 %v1742, %v1743
    %v1745 = vrot.slane %v1744, 2
    %v1746 = vadd.f32 %v1744, %v1745
    %v1747 = vrot.slane %v1746, 1
    %v1748 = vadd.f32 %v1746, %v1747
    %v1749 = vmul.f32 %v1748, 0.020408163
    %v1750 = vld [vmem:[%s2] sm:$0x1]
    %v1751 = vadd.f32 %v1749, %v1750
    %1752 = vst [vmem:[#allocation2] sm:$0x1] %v1751
    %s1753 = scalar_lea.vmem %s0, 640
    %v1754 = vld [vmem:[%s1753] sm:$0xf]
    %v1755 = vld [vmem:[%s1753 + $0x4] sm:$0xf]
    %v1756 = vld [vmem:[%s1753 + $0x8] sm:$0xf]
    %v1757 = vld [vmem:[%s1753 + $0xc] sm:$0xf]
    %v1758 = vld [vmem:[%s1753 + $0x10] sm:$0xf]
    %v1759 = vld [vmem:[%s1753 + $0x14] sm:$0xf]
    %v1760 = vld [vmem:[%s1753 + $0x18] sm:$0xf]
    %v1761 = vld [vmem:[%s1753 + $0x1c] sm:$0xf]
    %v1762 = vld [vmem:[%s1753 + $0x20] sm:$0xf]
    %v1763 = vld [vmem:[%s1753 + $0x24] sm:$0xf]
    %v1764 = vld [vmem:[%s1753 + $0x28] sm:$0xf]
    %v1765 = vld [vmem:[%s1753 + $0x2c] sm:$0xf]
    %v1766 = vld [vmem:[%s1753 + $0x30] sm:$0xf]
    %v1767 = vld [vmem:[%s1753 + $0x34] sm:$0xf]
    %v1768 = vld [vmem:[%s1753 + $0x38] sm:$0xf]
    %v1769 = vld [vmem:[%s1753 + $0x3c] sm:$0xf]
    %v1770 = vld [vmem:[%s1753 + $0x40] sm:$0xf]
    %v1771 = vld [vmem:[%s1753 + $0x44] sm:$0xf]
    %v1772 = vld [vmem:[%s1753 + $0x48] sm:$0xf]
    %v1773 = vld [vmem:[%s1753 + $0x4c] sm:$0xf]
    %v1774 = vld [vmem:[%s1753 + $0x50] sm:$0xf]
    %v1775 = vld [vmem:[%s1753 + $0x54] sm:$0xf]
    %v1776 = vld [vmem:[%s1753 + $0x58] sm:$0xf]
    %v1777 = vld [vmem:[%s1753 + $0x5c] sm:$0xf]
    %v1778 = vld [vmem:[%s1753 + $0x60] sm:$0xf]
    %v1779 = vld [vmem:[%s1753 + $0x64] sm:$0xf]
    %v1780 = vld [vmem:[%s1753 + $0x68] sm:$0xf]
    %v1781 = vld [vmem:[%s1753 + $0x6c] sm:$0xf]
    %v1782 = vld [vmem:[%s1753 + $0x70] sm:$0xf]
    %v1783 = vld [vmem:[%s1753 + $0x74] sm:$0xf]
    %v1784 = vld [vmem:[%s1753 + $0x78] sm:$0xf]
    %v1785 = vld [vmem:[%s1753 + $0x7c] sm:$0xf]
    %v1786 = vld [vmem:[%s1753 + $0x80] sm:$0xf]
    %v1787 = vld [vmem:[%s1753 + $0x84] sm:$0xf]
    %v1788 = vld [vmem:[%s1753 + $0x88] sm:$0xf]
    %v1789 = vld [vmem:[%s1753 + $0x8c] sm:$0xf]
    %v1790 = vld [vmem:[%s1753 + $0x90] sm:$0xf]
    %v1791 = vld [vmem:[%s1753 + $0x94] sm:$0xf]
    %v1792 = vld [vmem:[%s1753 + $0x98] sm:$0xf]
    %v1793 = vld [vmem:[%s1753 + $0x9c] sm:$0xf]
    %v1794 = vld [vmem:[%s1753 + $0xa0] sm:$0xf]
    %v1795 = vld [vmem:[%s1753 + $0xa4] sm:$0xf]
    %v1796 = vld [vmem:[%s1753 + $0xa8] sm:$0xf]
    %v1797 = vld [vmem:[%s1753 + $0xac] sm:$0xf]
    %v1798 = vld [vmem:[%s1753 + $0xb0] sm:$0xf]
    %v1799 = vld [vmem:[%s1753 + $0xb4] sm:$0xf]
    %v1800 = vld [vmem:[%s1753 + $0xb8] sm:$0xf]
    %v1801 = vld [vmem:[%s1753 + $0xbc] sm:$0xf]
    %v1802 = vld [vmem:[%s1753 + $0xc0] sm:$0xf]
    %v1803 = vld [vmem:[%s1753 + $0xc4] sm:$0xf]
    %v1804 = vld [vmem:[%s1753 + $0xc8] sm:$0xf]
    %v1805 = vld [vmem:[%s1753 + $0xcc] sm:$0xf]
    %v1806 = vld [vmem:[%s1753 + $0xd0] sm:$0xf]
    %v1807 = vld [vmem:[%s1753 + $0xd4] sm:$0xf]
    %v1808 = vld [vmem:[%s1753 + $0xd8] sm:$0xf]
    %v1809 = vld [vmem:[%s1753 + $0xdc] sm:$0xf]
    %v1810 = vld [vmem:[%s1753 + $0xe0] sm:$0xf]
    %v1811 = vld [vmem:[%s1753 + $0xe4] sm:$0xf]
    %v1812 = vld [vmem:[%s1753 + $0xe8] sm:$0xf]
    %v1813 = vld [vmem:[%s1753 + $0xec] sm:$0xf]
    %v1814 = vld [vmem:[%s1753 + $0xf0] sm:$0xf]
    %v1815 = vld [vmem:[%s1753 + $0xf4] sm:$0xf]
    %v1816 = vld [vmem:[%s1753 + $0xf8] sm:$0xf]
    %v1817 = vld [vmem:[%s1753 + $0xfc] sm:$0xf]
    %v1818 = vld [vmem:[%s1753 + $0x100] sm:$0xf]
    %v1819 = vld [vmem:[%s1753 + $0x104] sm:$0xf]
    %v1820 = vld [vmem:[%s1753 + $0x108] sm:$0xf]
    %v1821 = vld [vmem:[%s1753 + $0x10c] sm:$0xf]
    %v1822 = vld [vmem:[%s1753 + $0x110] sm:$0xf]
    %v1823 = vld [vmem:[%s1753 + $0x114] sm:$0xf]
    %v1824 = vld [vmem:[%s1753 + $0x118] sm:$0xf]
    %v1825 = vld [vmem:[%s1753 + $0x11c] sm:$0xf]
    %v1826 = vld [vmem:[%s1753 + $0x120] sm:$0xf]
    %v1827 = vld [vmem:[%s1753 + $0x124] sm:$0xf]
    %v1828 = vld [vmem:[%s1753 + $0x128] sm:$0xf]
    %v1829 = vld [vmem:[%s1753 + $0x12c] sm:$0xf]
    %v1830 = vld [vmem:[%s1753 + $0x130] sm:$0xf]
    %v1831 = vld [vmem:[%s1753 + $0x134] sm:$0xf]
    %v1832 = vld [vmem:[%s1753 + $0x138] sm:$0xf]
    %v1833 = vld [vmem:[%s1753 + $0x13c] sm:$0xf]
    %v1834 = vld [vmem:[%s1753 + $0x140] sm:$0xf]
    %v1835 = vld [vmem:[%s1753 + $0x144] sm:$0xf]
    %v1836 = vld [vmem:[%s1753 + $0x148] sm:$0xf]
    %v1837 = vld [vmem:[%s1753 + $0x14c] sm:$0xf]
    %v1838 = vld [vmem:[%s1753 + $0x150] sm:$0xf]
    %v1839 = vld [vmem:[%s1753 + $0x154] sm:$0xf]
    %v1840 = vld [vmem:[%s1753 + $0x158] sm:$0xf]
    %v1841 = vld [vmem:[%s1753 + $0x15c] sm:$0xf]
    %v1842 = vld [vmem:[%s1753 + $0x160] sm:$0xf]
    %v1843 = vld [vmem:[%s1753 + $0x164] sm:$0xf]
    %v1844 = vld [vmem:[%s1753 + $0x168] sm:$0xf]
    %v1845 = vld [vmem:[%s1753 + $0x16c] sm:$0xf]
    %v1846 = vld [vmem:[%s1753 + $0x170] sm:$0xf]
    %v1847 = vld [vmem:[%s1753 + $0x174] sm:$0xf]
    %v1848 = vld [vmem:[%s1753 + $0x178] sm:$0xf]
    %v1849 = vld [vmem:[%s1753 + $0x17c] sm:$0xf]
    %v1850 = vld [vmem:[%s1753 + $0x180] sm:$0xf]
    %v1851 = vld [vmem:[%s1753 + $0x184] sm:$0xf]
    %v1852 = vld [vmem:[%s1753 + $0x188] sm:$0xf]
    %v1853 = vld [vmem:[%s1753 + $0x18c] sm:$0xf]
    %v1854 = vld [vmem:[%s1753 + $0x190] sm:$0xf]
    %v1855 = vld [vmem:[%s1753 + $0x194] sm:$0xf]
    %v1856 = vld [vmem:[%s1753 + $0x198] sm:$0xf]
    %v1857 = vld [vmem:[%s1753 + $0x19c] sm:$0xf]
    %v1858 = vld [vmem:[%s1753 + $0x1a0] sm:$0xf]
    %v1859 = vld [vmem:[%s1753 + $0x1a4] sm:$0xf]
    %v1860 = vld [vmem:[%s1753 + $0x1a8] sm:$0xf]
    %v1861 = vld [vmem:[%s1753 + $0x1ac] sm:$0xf]
    %v1862 = vld [vmem:[%s1753 + $0x1b0] sm:$0xf]
    %v1863 = vld [vmem:[%s1753 + $0x1b4] sm:$0xf]
    %v1864 = vld [vmem:[%s1753 + $0x1b8] sm:$0xf]
    %v1865 = vld [vmem:[%s1753 + $0x1bc] sm:$0xf]
    %v1866 = vld [vmem:[%s1753 + $0x1c0] sm:$0xf]
    %v1867 = vld [vmem:[%s1753 + $0x1c4] sm:$0xf]
    %v1868 = vld [vmem:[%s1753 + $0x1c8] sm:$0xf]
    %v1869 = vld [vmem:[%s1753 + $0x1cc] sm:$0xf]
    %v1870 = vld [vmem:[%s1753 + $0x1d0] sm:$0xf]
    %v1871 = vld [vmem:[%s1753 + $0x1d4] sm:$0xf]
    %v1872 = vld [vmem:[%s1753 + $0x1d8] sm:$0xf]
    %v1873 = vld [vmem:[%s1753 + $0x1dc] sm:$0xf]
    %v1874 = vld [vmem:[%s1753 + $0x1e0] sm:$0xf]
    %v1875 = vld [vmem:[%s1753 + $0x1e4] sm:$0xf]
    %v1876 = vld [vmem:[%s1753 + $0x1e8] sm:$0xf]
    %v1877 = vld [vmem:[%s1753 + $0x1ec] sm:$0xf]
    %v1878 = vld [vmem:[%s1753 + $0x1f0] sm:$0xf]
    %v1879 = vld [vmem:[%s1753 + $0x1f4] sm:$0xf]
    %v1880 = vld [vmem:[%s1753 + $0x1f8] sm:$0xf]
    %v1881 = vld [vmem:[%s1753 + $0x1fc] sm:$0xf]
    %v1882 = vld [vmem:[%s1753 + $0x200] sm:$0xf]
    %v1883 = vld [vmem:[%s1753 + $0x204] sm:$0xf]
    %v1884 = vld [vmem:[%s1753 + $0x208] sm:$0xf]
    %v1885 = vld [vmem:[%s1753 + $0x20c] sm:$0xf]
    %v1886 = vld [vmem:[%s1753 + $0x210] sm:$0xf]
    %v1887 = vld [vmem:[%s1753 + $0x214] sm:$0xf]
    %v1888 = vld [vmem:[%s1753 + $0x218] sm:$0xf]
    %v1889 = vld [vmem:[%s1753 + $0x21c] sm:$0xf]
    %v1890 = vld [vmem:[%s1753 + $0x220] sm:$0xf]
    %v1891 = vld [vmem:[%s1753 + $0x224] sm:$0xf]
    %v1892 = vld [vmem:[%s1753 + $0x228] sm:$0xf]
    %v1893 = vld [vmem:[%s1753 + $0x22c] sm:$0xf]
    %v1894 = vld [vmem:[%s1753 + $0x230] sm:$0xf]
    %v1895 = vld [vmem:[%s1753 + $0x234] sm:$0xf]
    %v1896 = vld [vmem:[%s1753 + $0x238] sm:$0xf]
    %v1897 = vld [vmem:[%s1753 + $0x23c] sm:$0xf]
    %v1898 = vld [vmem:[%s1753 + $0x240] sm:$0xf]
    %v1899 = vld [vmem:[%s1753 + $0x244] sm:$0xf]
    %v1900 = vld [vmem:[%s1753 + $0x248] sm:$0xf]
    %v1901 = vld [vmem:[%s1753 + $0x24c] sm:$0xf]
    %v1902 = vld [vmem:[%s1753 + $0x250] sm:$0xf]
    %v1903 = vld [vmem:[%s1753 + $0x254] sm:$0xf]
    %v1904 = vld [vmem:[%s1753 + $0x258] sm:$0xf]
    %v1905 = vld [vmem:[%s1753 + $0x25c] sm:$0xf]
    %v1906 = vld [vmem:[%s1753 + $0x260] sm:$0xf]
    %v1907 = vld [vmem:[%s1753 + $0x264] sm:$0xf]
    %v1908 = vld [vmem:[%s1753 + $0x268] sm:$0xf]
    %v1909 = vld [vmem:[%s1753 + $0x26c] sm:$0xf]
    %v1910 = vld [vmem:[%s1753 + $0x270] sm:$0xf]
    %v1911 = vld [vmem:[%s1753 + $0x274] sm:$0xf]
    %v1912 = vld [vmem:[%s1753 + $0x278] sm:$0xf]
    %v1913 = vld [vmem:[%s1753 + $0x27c] sm:$0xf]
    %v1914 = vld [vmem:[%s1] sm:$0xf]
    %v1915 = vld [vmem:[%s1 + $0x4] sm:$0xf]
    %v1916 = vld [vmem:[%s1 + $0x8] sm:$0xf]
    %v1917 = vld [vmem:[%s1 + $0xc] sm:$0xf]
    %v1918 = vld [vmem:[%s1 + $0x10] sm:$0xf]
    %v1919 = vld [vmem:[%s1 + $0x14] sm:$0xf]
    %v1920 = vld [vmem:[%s1 + $0x18] sm:$0xf]
    %v1921 = vld [vmem:[%s1 + $0x1c] sm:$0xf]
    %v1922 = vld [vmem:[%s1 + $0x20] sm:$0xf]
    %v1923 = vld [vmem:[%s1 + $0x24] sm:$0xf]
    %v1924 = vld [vmem:[%s1 + $0x28] sm:$0xf]
    %v1925 = vld [vmem:[%s1 + $0x2c] sm:$0xf]
    %v1926 = vld [vmem:[%s1 + $0x30] sm:$0xf]
    %v1927 = vld [vmem:[%s1 + $0x34] sm:$0xf]
    %v1928 = vld [vmem:[%s1 + $0x38] sm:$0xf]
    %v1929 = vld [vmem:[%s1 + $0x3c] sm:$0xf]
    %v1930 = vld [vmem:[%s1 + $0x40] sm:$0xf]
    %v1931 = vld [vmem:[%s1 + $0x44] sm:$0xf]
    %v1932 = vld [vmem:[%s1 + $0x48] sm:$0xf]
    %v1933 = vld [vmem:[%s1 + $0x4c] sm:$0xf]
    %v1934 = vld [vmem:[%s1 + $0x50] sm:$0xf]
    %v1935 = vld [vmem:[%s1 + $0x54] sm:$0xf]
    %v1936 = vld [vmem:[%s1 + $0x58] sm:$0xf]
    %v1937 = vld [vmem:[%s1 + $0x5c] sm:$0xf]
    %v1938 = vld [vmem:[%s1 + $0x60] sm:$0xf]
    %v1939 = vld [vmem:[%s1 + $0x64] sm:$0xf]
    %v1940 = vld [vmem:[%s1 + $0x68] sm:$0xf]
    %v1941 = vld [vmem:[%s1 + $0x6c] sm:$0xf]
    %v1942 = vld [vmem:[%s1 + $0x70] sm:$0xf]
    %v1943 = vld [vmem:[%s1 + $0x74] sm:$0xf]
    %v1944 = vld [vmem:[%s1 + $0x78] sm:$0xf]
    %v1945 = vld [vmem:[%s1 + $0x7c] sm:$0xf]
    %v1946 = vld [vmem:[%s1 + $0x80] sm:$0xf]
    %v1947 = vld [vmem:[%s1 + $0x84] sm:$0xf]
    %v1948 = vld [vmem:[%s1 + $0x88] sm:$0xf]
    %v1949 = vld [vmem:[%s1 + $0x8c] sm:$0xf]
    %v1950 = vld [vmem:[%s1 + $0x90] sm:$0xf]
    %v1951 = vld [vmem:[%s1 + $0x94] sm:$0xf]
    %v1952 = vld [vmem:[%s1 + $0x98] sm:$0xf]
    %v1953 = vld [vmem:[%s1 + $0x9c] sm:$0xf]
    %v1954 = vld [vmem:[%s1 + $0xa0] sm:$0xf]
    %v1955 = vld [vmem:[%s1 + $0xa4] sm:$0xf]
    %v1956 = vld [vmem:[%s1 + $0xa8] sm:$0xf]
    %v1957 = vld [vmem:[%s1 + $0xac] sm:$0xf]
    %v1958 = vld [vmem:[%s1 + $0xb0] sm:$0xf]
    %v1959 = vld [vmem:[%s1 + $0xb4] sm:$0xf]
    %v1960 = vld [vmem:[%s1 + $0xb8] sm:$0xf]
    %v1961 = vld [vmem:[%s1 + $0xbc] sm:$0xf]
    %v1962 = vld [vmem:[%s1 + $0xc0] sm:$0xf]
    %v1963 = vld [vmem:[%s1 + $0xc4] sm:$0xf]
    %v1964 = vld [vmem:[%s1 + $0xc8] sm:$0xf]
    %v1965 = vld [vmem:[%s1 + $0xcc] sm:$0xf]
    %v1966 = vld [vmem:[%s1 + $0xd0] sm:$0xf]
    %v1967 = vld [vmem:[%s1 + $0xd4] sm:$0xf]
    %v1968 = vld [vmem:[%s1 + $0xd8] sm:$0xf]
    %v1969 = vld [vmem:[%s1 + $0xdc] sm:$0xf]
    %v1970 = vld [vmem:[%s1 + $0xe0] sm:$0xf]
    %v1971 = vld [vmem:[%s1 + $0xe4] sm:$0xf]
    %v1972 = vld [vmem:[%s1 + $0xe8] sm:$0xf]
    %v1973 = vld [vmem:[%s1 + $0xec] sm:$0xf]
    %v1974 = vld [vmem:[%s1 + $0xf0] sm:$0xf]
    %v1975 = vld [vmem:[%s1 + $0xf4] sm:$0xf]
    %v1976 = vld [vmem:[%s1 + $0xf8] sm:$0xf]
    %v1977 = vld [vmem:[%s1 + $0xfc] sm:$0xf]
    %v1978 = vld [vmem:[%s1 + $0x100] sm:$0xf]
    %v1979 = vld [vmem:[%s1 + $0x104] sm:$0xf]
    %v1980 = vld [vmem:[%s1 + $0x108] sm:$0xf]
    %v1981 = vld [vmem:[%s1 + $0x10c] sm:$0xf]
    %v1982 = vld [vmem:[%s1 + $0x110] sm:$0xf]
    %v1983 = vld [vmem:[%s1 + $0x114] sm:$0xf]
    %v1984 = vld [vmem:[%s1 + $0x118] sm:$0xf]
    %v1985 = vld [vmem:[%s1 + $0x11c] sm:$0xf]
    %v1986 = vld [vmem:[%s1 + $0x120] sm:$0xf]
    %v1987 = vld [vmem:[%s1 + $0x124] sm:$0xf]
    %v1988 = vld [vmem:[%s1 + $0x128] sm:$0xf]
    %v1989 = vld [vmem:[%s1 + $0x12c] sm:$0xf]
    %v1990 = vld [vmem:[%s1 + $0x130] sm:$0xf]
    %v1991 = vld [vmem:[%s1 + $0x134] sm:$0xf]
    %v1992 = vld [vmem:[%s1 + $0x138] sm:$0xf]
    %v1993 = vld [vmem:[%s1 + $0x13c] sm:$0xf]
    %v1994 = vld [vmem:[%s1 + $0x140] sm:$0xf]
    %v1995 = vld [vmem:[%s1 + $0x144] sm:$0xf]
    %v1996 = vld [vmem:[%s1 + $0x148] sm:$0xf]
    %v1997 = vld [vmem:[%s1 + $0x14c] sm:$0xf]
    %v1998 = vld [vmem:[%s1 + $0x150] sm:$0xf]
    %v1999 = vld [vmem:[%s1 + $0x154] sm:$0xf]
    %v2000 = vld [vmem:[%s1 + $0x158] sm:$0xf]
    %v2001 = vld [vmem:[%s1 + $0x15c] sm:$0xf]
    %v2002 = vld [vmem:[%s1 + $0x160] sm:$0xf]
    %v2003 = vld [vmem:[%s1 + $0x164] sm:$0xf]
    %v2004 = vld [vmem:[%s1 + $0x168] sm:$0xf]
    %v2005 = vld [vmem:[%s1 + $0x16c] sm:$0xf]
    %v2006 = vld [vmem:[%s1 + $0x170] sm:$0xf]
    %v2007 = vld [vmem:[%s1 + $0x174] sm:$0xf]
    %v2008 = vld [vmem:[%s1 + $0x178] sm:$0xf]
    %v2009 = vld [vmem:[%s1 + $0x17c] sm:$0xf]
    %v2010 = vld [vmem:[%s1 + $0x180] sm:$0xf]
    %v2011 = vld [vmem:[%s1 + $0x184] sm:$0xf]
    %v2012 = vld [vmem:[%s1 + $0x188] sm:$0xf]
    %v2013 = vld [vmem:[%s1 + $0x18c] sm:$0xf]
    %v2014 = vld [vmem:[%s1 + $0x190] sm:$0xf]
    %v2015 = vld [vmem:[%s1 + $0x194] sm:$0xf]
    %v2016 = vld [vmem:[%s1 + $0x198] sm:$0xf]
    %v2017 = vld [vmem:[%s1 + $0x19c] sm:$0xf]
    %v2018 = vld [vmem:[%s1 + $0x1a0] sm:$0xf]
    %v2019 = vld [vmem:[%s1 + $0x1a4] sm:$0xf]
    %v2020 = vld [vmem:[%s1 + $0x1a8] sm:$0xf]
    %v2021 = vld [vmem:[%s1 + $0x1ac] sm:$0xf]
    %v2022 = vld [vmem:[%s1 + $0x1b0] sm:$0xf]
    %v2023 = vld [vmem:[%s1 + $0x1b4] sm:$0xf]
    %v2024 = vld [vmem:[%s1 + $0x1b8] sm:$0xf]
    %v2025 = vld [vmem:[%s1 + $0x1bc] sm:$0xf]
    %v2026 = vld [vmem:[%s1 + $0x1c0] sm:$0xf]
    %v2027 = vld [vmem:[%s1 + $0x1c4] sm:$0xf]
    %v2028 = vld [vmem:[%s1 + $0x1c8] sm:$0xf]
    %v2029 = vld [vmem:[%s1 + $0x1cc] sm:$0xf]
    %v2030 = vld [vmem:[%s1 + $0x1d0] sm:$0xf]
    %v2031 = vld [vmem:[%s1 + $0x1d4] sm:$0xf]
    %v2032 = vld [vmem:[%s1 + $0x1d8] sm:$0xf]
    %v2033 = vld [vmem:[%s1 + $0x1dc] sm:$0xf]
    %v2034 = vld [vmem:[%s1 + $0x1e0] sm:$0xf]
    %v2035 = vld [vmem:[%s1 + $0x1e4] sm:$0xf]
    %v2036 = vld [vmem:[%s1 + $0x1e8] sm:$0xf]
    %v2037 = vld [vmem:[%s1 + $0x1ec] sm:$0xf]
    %v2038 = vld [vmem:[%s1 + $0x1f0] sm:$0xf]
    %v2039 = vld [vmem:[%s1 + $0x1f4] sm:$0xf]
    %v2040 = vld [vmem:[%s1 + $0x1f8] sm:$0xf]
    %v2041 = vld [vmem:[%s1 + $0x1fc] sm:$0xf]
    %v2042 = vld [vmem:[%s1 + $0x200] sm:$0xf]
    %v2043 = vld [vmem:[%s1 + $0x204] sm:$0xf]
    %v2044 = vld [vmem:[%s1 + $0x208] sm:$0xf]
    %v2045 = vld [vmem:[%s1 + $0x20c] sm:$0xf]
    %v2046 = vld [vmem:[%s1 + $0x210] sm:$0xf]
    %v2047 = vld [vmem:[%s1 + $0x214] sm:$0xf]
    %v2048 = vld [vmem:[%s1 + $0x218] sm:$0xf]
    %v2049 = vld [vmem:[%s1 + $0x21c] sm:$0xf]
    %v2050 = vld [vmem:[%s1 + $0x220] sm:$0xf]
    %v2051 = vld [vmem:[%s1 + $0x224] sm:$0xf]
    %v2052 = vld [vmem:[%s1 + $0x228] sm:$0xf]
    %v2053 = vld [vmem:[%s1 + $0x22c] sm:$0xf]
    %v2054 = vld [vmem:[%s1 + $0x230] sm:$0xf]
    %v2055 = vld [vmem:[%s1 + $0x234] sm:$0xf]
    %v2056 = vld [vmem:[%s1 + $0x238] sm:$0xf]
    %v2057 = vld [vmem:[%s1 + $0x23c] sm:$0xf]
    %v2058 = vld [vmem:[%s1 + $0x240] sm:$0xf]
    %v2059 = vld [vmem:[%s1 + $0x244] sm:$0xf]
    %v2060 = vld [vmem:[%s1 + $0x248] sm:$0xf]
    %v2061 = vld [vmem:[%s1 + $0x24c] sm:$0xf]
    %v2062 = vld [vmem:[%s1 + $0x250] sm:$0xf]
    %v2063 = vld [vmem:[%s1 + $0x254] sm:$0xf]
    %v2064 = vld [vmem:[%s1 + $0x258] sm:$0xf]
    %v2065 = vld [vmem:[%s1 + $0x25c] sm:$0xf]
    %v2066 = vld [vmem:[%s1 + $0x260] sm:$0xf]
    %v2067 = vld [vmem:[%s1 + $0x264] sm:$0xf]
    %v2068 = vld [vmem:[%s1 + $0x268] sm:$0xf]
    %v2069 = vld [vmem:[%s1 + $0x26c] sm:$0xf]
    %v2070 = vld [vmem:[%s1 + $0x270] sm:$0xf]
    %v2071 = vld [vmem:[%s1 + $0x274] sm:$0xf]
    %v2072 = vld [vmem:[%s1 + $0x278] sm:$0xf]
    %v2073 = vld [vmem:[%s1 + $0x27c] sm:$0xf]
    %v2234 = vunpack.c.l.b16 %v1754
    %v2235 = vunpack.c.l.b16 %v1755
    %v2236 = vunpack.c.l.b16 %v1756
    %v2237 = vunpack.c.l.b16 %v1757
    %v2238 = vunpack.c.l.b16 %v1758
    %v2239 = vunpack.c.l.b16 %v1759
    %v2240 = vunpack.c.l.b16 %v1760
    %v2241 = vunpack.c.l.b16 %v1761
    %v2242 = vunpack.c.l.b16 %v1762
    %v2243 = vunpack.c.l.b16 %v1763
    %v2244 = vunpack.c.l.b16 %v1764
    %v2245 = vunpack.c.l.b16 %v1765
    %v2246 = vunpack.c.l.b16 %v1766
    %v2247 = vunpack.c.l.b16 %v1767
    %v2248 = vunpack.c.l.b16 %v1768
    %v2249 = vunpack.c.l.b16 %v1769
    %v2250 = vunpack.c.l.b16 %v1770
    %v2251 = vunpack.c.l.b16 %v1771
    %v2252 = vunpack.c.l.b16 %v1772
    %v2253 = vunpack.c.l.b16 %v1773
    %v2254 = vunpack.c.l.b16 %v1774
    %v2255 = vunpack.c.l.b16 %v1775
    %v2256 = vunpack.c.l.b16 %v1776
    %v2257 = vunpack.c.l.b16 %v1777
    %v2258 = vunpack.c.l.b16 %v1778
    %v2259 = vunpack.c.l.b16 %v1779
    %v2260 = vunpack.c.l.b16 %v1780
    %v2261 = vunpack.c.l.b16 %v1781
    %v2262 = vunpack.c.l.b16 %v1782
    %v2263 = vunpack.c.l.b16 %v1783
    %v2264 = vunpack.c.l.b16 %v1784
    %v2265 = vunpack.c.l.b16 %v1785
    %v2266 = vunpack.c.l.b16 %v1786
    %v2267 = vunpack.c.l.b16 %v1787
    %v2268 = vunpack.c.l.b16 %v1788
    %v2269 = vunpack.c.l.b16 %v1789
    %v2270 = vunpack.c.l.b16 %v1790
    %v2271 = vunpack.c.l.b16 %v1791
    %v2272 = vunpack.c.l.b16 %v1792
    %v2273 = vunpack.c.l.b16 %v1793
    %v2274 = vunpack.c.l.b16 %v1794
    %v2275 = vunpack.c.l.b16 %v1795
    %v2276 = vunpack.c.l.b16 %v1796
    %v2277 = vunpack.c.l.b16 %v1797
    %v2278 = vunpack.c.l.b16 %v1798
    %v2279 = vunpack.c.l.b16 %v1799
    %v2280 = vunpack.c.l.b16 %v1800
    %v2281 = vunpack.c.l.b16 %v1801
    %v2282 = vunpack.c.l.b16 %v1802
    %v2283 = vunpack.c.l.b16 %v1803
    %v2284 = vunpack.c.l.b16 %v1804
    %v2285 = vunpack.c.l.b16 %v1805
    %v2286 = vunpack.c.l.b16 %v1806
    %v2287 = vunpack.c.l.b16 %v1807
    %v2288 = vunpack.c.l.b16 %v1808
    %v2289 = vunpack.c.l.b16 %v1809
    %v2290 = vunpack.c.l.b16 %v1810
    %v2291 = vunpack.c.l.b16 %v1811
    %v2292 = vunpack.c.l.b16 %v1812
    %v2293 = vunpack.c.l.b16 %v1813
    %v2294 = vunpack.c.l.b16 %v1814
    %v2295 = vunpack.c.l.b16 %v1815
    %v2296 = vunpack.c.l.b16 %v1816
    %v2297 = vunpack.c.l.b16 %v1817
    %v2298 = vunpack.c.l.b16 %v1818
    %v2299 = vunpack.c.l.b16 %v1819
    %v2300 = vunpack.c.l.b16 %v1820
    %v2301 = vunpack.c.l.b16 %v1821
    %v2302 = vunpack.c.l.b16 %v1822
    %v2303 = vunpack.c.l.b16 %v1823
    %v2304 = vunpack.c.l.b16 %v1824
    %v2305 = vunpack.c.l.b16 %v1825
    %v2306 = vunpack.c.l.b16 %v1826
    %v2307 = vunpack.c.l.b16 %v1827
    %v2308 = vunpack.c.l.b16 %v1828
    %v2309 = vunpack.c.l.b16 %v1829
    %v2310 = vunpack.c.l.b16 %v1830
    %v2311 = vunpack.c.l.b16 %v1831
    %v2312 = vunpack.c.l.b16 %v1832
    %v2313 = vunpack.c.l.b16 %v1833
    %v2314 = vunpack.c.l.b16 %v1834
    %v2315 = vunpack.c.l.b16 %v1835
    %v2316 = vunpack.c.l.b16 %v1836
    %v2317 = vunpack.c.l.b16 %v1837
    %v2318 = vunpack.c.l.b16 %v1838
    %v2319 = vunpack.c.l.b16 %v1839
    %v2320 = vunpack.c.l.b16 %v1840
    %v2321 = vunpack.c.l.b16 %v1841
    %v2322 = vunpack.c.l.b16 %v1842
    %v2323 = vunpack.c.l.b16 %v1843
    %v2324 = vunpack.c.l.b16 %v1844
    %v2325 = vunpack.c.l.b16 %v1845
    %v2326 = vunpack.c.l.b16 %v1846
    %v2327 = vunpack.c.l.b16 %v1847
    %v2328 = vunpack.c.l.b16 %v1848
    %v2329 = vunpack.c.l.b16 %v1849
    %v2330 = vunpack.c.l.b16 %v1850
    %v2331 = vunpack.c.l.b16 %v1851
    %v2332 = vunpack.c.l.b16 %v1852
    %v2333 = vunpack.c.l.b16 %v1853
    %v2334 = vunpack.c.l.b16 %v1854
    %v2335 = vunpack.c.l.b16 %v1855
    %v2336 = vunpack.c.l.b16 %v1856
    %v2337 = vunpack.c.l.b16 %v1857
    %v2338 = vunpack.c.l.b16 %v1858
    %v2339 = vunpack.c.l.b16 %v1859
    %v2340 = vunpack.c.l.b16 %v1860
    %v2341 = vunpack.c.l.b16 %v1861
    %v2342 = vunpack.c.l.b16 %v1862
    %v2343 = vunpack.c.l.b16 %v1863
    %v2344 = vunpack.c.l.b16 %v1864
    %v2345 = vunpack.c.l.b16 %v1865
    %v2346 = vunpack.c.l.b16 %v1866
    %v2347 = vunpack.c.l.b16 %v1867
    %v2348 = vunpack.c.l.b16 %v1868
    %v2349 = vunpack.c.l.b16 %v1869
    %v2350 = vunpack.c.l.b16 %v1870
    %v2351 = vunpack.c.l.b16 %v1871
    %v2352 = vunpack.c.l.b16 %v1872
    %v2353 = vunpack.c.l.b16 %v1873
    %v2354 = vunpack.c.l.b16 %v1874
    %v2355 = vunpack.c.l.b16 %v1875
    %v2356 = vunpack.c.l.b16 %v1876
    %v2357 = vunpack.c.l.b16 %v1877
    %v2358 = vunpack.c.l.b16 %v1878
    %v2359 = vunpack.c.l.b16 %v1879
    %v2360 = vunpack.c.l.b16 %v1880
    %v2361 = vunpack.c.l.b16 %v1881
    %v2362 = vunpack.c.l.b16 %v1882
    %v2363 = vunpack.c.l.b16 %v1883
    %v2364 = vunpack.c.l.b16 %v1884
    %v2365 = vunpack.c.l.b16 %v1885
    %v2366 = vunpack.c.l.b16 %v1886
    %v2367 = vunpack.c.l.b16 %v1887
    %v2368 = vunpack.c.l.b16 %v1888
    %v2369 = vunpack.c.l.b16 %v1889
    %v2370 = vunpack.c.l.b16 %v1890
    %v2371 = vunpack.c.l.b16 %v1891
    %v2372 = vunpack.c.l.b16 %v1892
    %v2373 = vunpack.c.l.b16 %v1893
    %v2374 = vunpack.c.l.b16 %v1894
    %v2375 = vunpack.c.l.b16 %v1895
    %v2376 = vunpack.c.l.b16 %v1896
    %v2377 = vunpack.c.l.b16 %v1897
    %v2378 = vunpack.c.l.b16 %v1898
    %v2379 = vunpack.c.l.b16 %v1899
    %v2380 = vunpack.c.l.b16 %v1900
    %v2381 = vunpack.c.l.b16 %v1901
    %v2382 = vunpack.c.l.b16 %v1902
    %v2383 = vunpack.c.l.b16 %v1903
    %v2384 = vunpack.c.l.b16 %v1904
    %v2385 = vunpack.c.l.b16 %v1905
    %v2386 = vunpack.c.l.b16 %v1906
    %v2387 = vunpack.c.l.b16 %v1907
    %v2388 = vunpack.c.l.b16 %v1908
    %v2389 = vunpack.c.l.b16 %v1909
    %v2390 = vunpack.c.l.b16 %v1910
    %v2391 = vunpack.c.l.b16 %v1911
    %v2392 = vunpack.c.l.b16 %v1912
    %v2393 = vunpack.c.l.b16 %v1913
    %v2394 = vpack.c.b16 %v2235, %v2234
    %v2395 = vpack.c.b16 %v2237, %v2236
    %v2396 = vpack.c.b16 %v2239, %v2238
    %v2397 = vpack.c.b16 %v2241, %v2240
    %v2398 = vpack.c.b16 %v2243, %v2242
    %v2399 = vpack.c.b16 %v2245, %v2244
    %v2400 = vpack.c.b16 %v2247, %v2246
    %v2401 = vpack.c.b16 %v2249, %v2248
    %v2402 = vpack.c.b16 %v2251, %v2250
    %v2403 = vpack.c.b16 %v2253, %v2252
    %v2404 = vpack.c.b16 %v2255, %v2254
    %v2405 = vpack.c.b16 %v2257, %v2256
    %v2406 = vpack.c.b16 %v2259, %v2258
    %v2407 = vpack.c.b16 %v2261, %v2260
    %v2408 = vpack.c.b16 %v2263, %v2262
    %v2409 = vpack.c.b16 %v2265, %v2264
    %v2410 = vpack.c.b16 %v2267, %v2266
    %v2411 = vpack.c.b16 %v2269, %v2268
    %v2412 = vpack.c.b16 %v2271, %v2270
    %v2413 = vpack.c.b16 %v2273, %v2272
    %v2414 = vpack.c.b16 %v2275, %v2274
    %v2415 = vpack.c.b16 %v2277, %v2276
    %v2416 = vpack.c.b16 %v2279, %v2278
    %v2417 = vpack.c.b16 %v2281, %v2280
    %v2418 = vpack.c.b16 %v2283, %v2282
    %v2419 = vpack.c.b16 %v2285, %v2284
    %v2420 = vpack.c.b16 %v2287, %v2286
    %v2421 = vpack.c.b16 %v2289, %v2288
    %v2422 = vpack.c.b16 %v2291, %v2290
    %v2423 = vpack.c.b16 %v2293, %v2292
    %v2424 = vpack.c.b16 %v2295, %v2294
    %v2425 = vpack.c.b16 %v2297, %v2296
    %v2426 = vpack.c.b16 %v2299, %v2298
    %v2427 = vpack.c.b16 %v2301, %v2300
    %v2428 = vpack.c.b16 %v2303, %v2302
    %v2429 = vpack.c.b16 %v2305, %v2304
    %v2430 = vpack.c.b16 %v2307, %v2306
    %v2431 = vpack.c.b16 %v2309, %v2308
    %v2432 = vpack.c.b16 %v2311, %v2310
    %v2433 = vpack.c.b16 %v2313, %v2312
    %v2434 = vpack.c.b16 %v2315, %v2314
    %v2435 = vpack.c.b16 %v2317, %v2316
    %v2436 = vpack.c.b16 %v2319, %v2318
    %v2437 = vpack.c.b16 %v2321, %v2320
    %v2438 = vpack.c.b16 %v2323, %v2322
    %v2439 = vpack.c.b16 %v2325, %v2324
    %v2440 = vpack.c.b16 %v2327, %v2326
    %v2441 = vpack.c.b16 %v2329, %v2328
    %v2442 = vpack.c.b16 %v2331, %v2330
    %v2443 = vpack.c.b16 %v2333, %v2332
    %v2444 = vpack.c.b16 %v2335, %v2334
    %v2445 = vpack.c.b16 %v2337, %v2336
    %v2446 = vpack.c.b16 %v2339, %v2338
    %v2447 = vpack.c.b16 %v2341, %v2340
    %v2448 = vpack.c.b16 %v2343, %v2342
    %v2449 = vpack.c.b16 %v2345, %v2344
    %v2450 = vpack.c.b16 %v2347, %v2346
    %v2451 = vpack.c.b16 %v2349, %v2348
    %v2452 = vpack.c.b16 %v2351, %v2350
    %v2453 = vpack.c.b16 %v2353, %v2352
    %v2454 = vpack.c.b16 %v2355, %v2354
    %v2455 = vpack.c.b16 %v2357, %v2356
    %v2456 = vpack.c.b16 %v2359, %v2358
    %v2457 = vpack.c.b16 %v2361, %v2360
    %v2458 = vpack.c.b16 %v2363, %v2362
    %v2459 = vpack.c.b16 %v2365, %v2364
    %v2460 = vpack.c.b16 %v2367, %v2366
    %v2461 = vpack.c.b16 %v2369, %v2368
    %v2462 = vpack.c.b16 %v2371, %v2370
    %v2463 = vpack.c.b16 %v2373, %v2372
    %v2464 = vpack.c.b16 %v2375, %v2374
    %v2465 = vpack.c.b16 %v2377, %v2376
    %v2466 = vpack.c.b16 %v2379, %v2378
    %v2467 = vpack.c.b16 %v2381, %v2380
    %v2468 = vpack.c.b16 %v2383, %v2382
    %v2469 = vpack.c.b16 %v2385, %v2384
    %v2470 = vpack.c.b16 %v2387, %v2386
    %v2471 = vpack.c.b16 %v2389, %v2388
    %v2472 = vpack.c.b16 %v2391, %v2390
    %v2473 = vpack.c.b16 %v2393, %v2392
    %2554 = vxpose.xlu0.c.b16.start [1/8] %v2394, 128
    %2555 = vxpose.xlu0.c.b16.cont [2/8] %v2395, 128
    %2556 = vxpose.xlu0.c.b16.cont [3/8] %v2396, 128
    %2557 = vxpose.xlu0.c.b16.cont [4/8] %v2397, 128
    %2558 = vxpose.xlu0.c.b16.cont [5/8] %v2398, 128
    %2559 = vxpose.xlu0.c.b16.cont [6/8] %v2399, 128
    %2560 = vxpose.xlu0.c.b16.cont [7/8] %v2400, 128
    %2561 = vxpose.xlu0.c.b16.end [8/8] %v2401, 128
    %v2562 = vpop.trf.xlu0
    %v2563 = vpop.trf.xlu0
    %v2564 = vpop.trf.xlu0
    %v2565 = vpop.trf.xlu0
    %v2566 = vpop.trf.xlu0
    %v2567 = vpop.trf.xlu0
    %v2568 = vpop.trf.xlu0
    %v2569 = vpop.trf.xlu0
    %2570 = vxpose.xlu0.c.b16.start [1/8] %v2402, 128
    %2571 = vxpose.xlu0.c.b16.cont [2/8] %v2403, 128
    %2572 = vxpose.xlu0.c.b16.cont [3/8] %v2404, 128
    %2573 = vxpose.xlu0.c.b16.cont [4/8] %v2405, 128
    %2574 = vxpose.xlu0.c.b16.cont [5/8] %v2406, 128
    %2575 = vxpose.xlu0.c.b16.cont [6/8] %v2407, 128
    %2576 = vxpose.xlu0.c.b16.cont [7/8] %v2408, 128
    %2577 = vxpose.xlu0.c.b16.end [8/8] %v2409, 128
    %v2578 = vpop.trf.xlu0
    %v2579 = vpop.trf.xlu0
    %v2580 = vpop.trf.xlu0
    %v2581 = vpop.trf.xlu0
    %v2582 = vpop.trf.xlu0
    %v2583 = vpop.trf.xlu0
    %v2584 = vpop.trf.xlu0
    %v2585 = vpop.trf.xlu0
    %2586 = vxpose.xlu0.c.b16.start [1/8] %v2410, 128
    %2587 = vxpose.xlu0.c.b16.cont [2/8] %v2411, 128
    %2588 = vxpose.xlu0.c.b16.cont [3/8] %v2412, 128
    %2589 = vxpose.xlu0.c.b16.cont [4/8] %v2413, 128
    %2590 = vxpose.xlu0.c.b16.cont [5/8] %v2414, 128
    %2591 = vxpose.xlu0.c.b16.cont [6/8] %v2415, 128
    %2592 = vxpose.xlu0.c.b16.cont [7/8] %v2416, 128
    %2593 = vxpose.xlu0.c.b16.end [8/8] %v2417, 128
    %v2594 = vpop.trf.xlu0
    %v2595 = vpop.trf.xlu0
    %v2596 = vpop.trf.xlu0
    %v2597 = vpop.trf.xlu0
    %v2598 = vpop.trf.xlu0
    %v2599 = vpop.trf.xlu0
    %v2600 = vpop.trf.xlu0
    %v2601 = vpop.trf.xlu0
    %2602 = vxpose.xlu0.c.b16.start [1/8] %v2418, 128
    %2603 = vxpose.xlu0.c.b16.cont [2/8] %v2419, 128
    %2604 = vxpose.xlu0.c.b16.cont [3/8] %v2420, 128
    %2605 = vxpose.xlu0.c.b16.cont [4/8] %v2421, 128
    %2606 = vxpose.xlu0.c.b16.cont [5/8] %v2422, 128
    %2607 = vxpose.xlu0.c.b16.cont [6/8] %v2423, 128
    %2608 = vxpose.xlu0.c.b16.cont [7/8] %v2424, 128
    %2609 = vxpose.xlu0.c.b16.end [8/8] %v2425, 128
    %v2610 = vpop.trf.xlu0
    %v2611 = vpop.trf.xlu0
    %v2612 = vpop.trf.xlu0
    %v2613 = vpop.trf.xlu0
    %v2614 = vpop.trf.xlu0
    %v2615 = vpop.trf.xlu0
    %v2616 = vpop.trf.xlu0
    %v2617 = vpop.trf.xlu0
    %2618 = vxpose.xlu0.c.b16.start [1/8] %v2426, 128
    %2619 = vxpose.xlu0.c.b16.cont [2/8] %v2427, 128
    %2620 = vxpose.xlu0.c.b16.cont [3/8] %v2428, 128
    %2621 = vxpose.xlu0.c.b16.cont [4/8] %v2429, 128
    %2622 = vxpose.xlu0.c.b16.cont [5/8] %v2430, 128
    %2623 = vxpose.xlu0.c.b16.cont [6/8] %v2431, 128
    %2624 = vxpose.xlu0.c.b16.cont [7/8] %v2432, 128
    %2625 = vxpose.xlu0.c.b16.end [8/8] %v2433, 128
    %v2626 = vpop.trf.xlu0
    %v2627 = vpop.trf.xlu0
    %v2628 = vpop.trf.xlu0
    %v2629 = vpop.trf.xlu0
    %v2630 = vpop.trf.xlu0
    %v2631 = vpop.trf.xlu0
    %v2632 = vpop.trf.xlu0
    %v2633 = vpop.trf.xlu0
    %2634 = vxpose.xlu0.c.b16.start [1/8] %v2434, 128
    %2635 = vxpose.xlu0.c.b16.cont [2/8] %v2435, 128
    %2636 = vxpose.xlu0.c.b16.cont [3/8] %v2436, 128
    %2637 = vxpose.xlu0.c.b16.cont [4/8] %v2437, 128
    %2638 = vxpose.xlu0.c.b16.cont [5/8] %v2438, 128
    %2639 = vxpose.xlu0.c.b16.cont [6/8] %v2439, 128
    %2640 = vxpose.xlu0.c.b16.cont [7/8] %v2440, 128
    %2641 = vxpose.xlu0.c.b16.end [8/8] %v2441, 128
    %v2642 = vpop.trf.xlu0
    %v2643 = vpop.trf.xlu0
    %v2644 = vpop.trf.xlu0
    %v2645 = vpop.trf.xlu0
    %v2646 = vpop.trf.xlu0
    %v2647 = vpop.trf.xlu0
    %v2648 = vpop.trf.xlu0
    %v2649 = vpop.trf.xlu0
    %2650 = vxpose.xlu0.c.b16.start [1/8] %v2442, 128
    %2651 = vxpose.xlu0.c.b16.cont [2/8] %v2443, 128
    %2652 = vxpose.xlu0.c.b16.cont [3/8] %v2444, 128
    %2653 = vxpose.xlu0.c.b16.cont [4/8] %v2445, 128
    %2654 = vxpose.xlu0.c.b16.cont [5/8] %v2446, 128
    %2655 = vxpose.xlu0.c.b16.cont [6/8] %v2447, 128
    %2656 = vxpose.xlu0.c.b16.cont [7/8] %v2448, 128
    %2657 = vxpose.xlu0.c.b16.end [8/8] %v2449, 128
    %v2658 = vpop.trf.xlu0
    %v2659 = vpop.trf.xlu0
    %v2660 = vpop.trf.xlu0
    %v2661 = vpop.trf.xlu0
    %v2662 = vpop.trf.xlu0
    %v2663 = vpop.trf.xlu0
    %v2664 = vpop.trf.xlu0
    %v2665 = vpop.trf.xlu0
    %2666 = vxpose.xlu0.c.b16.start [1/8] %v2450, 128
    %2667 = vxpose.xlu0.c.b16.cont [2/8] %v2451, 128
    %2668 = vxpose.xlu0.c.b16.cont [3/8] %v2452, 128
    %2669 = vxpose.xlu0.c.b16.cont [4/8] %v2453, 128
    %2670 = vxpose.xlu0.c.b16.cont [5/8] %v2454, 128
    %2671 = vxpose.xlu0.c.b16.cont [6/8] %v2455, 128
    %2672 = vxpose.xlu0.c.b16.cont [7/8] %v2456, 128
    %2673 = vxpose.xlu0.c.b16.end [8/8] %v2457, 128
    %v2674 = vpop.trf.xlu0
    %v2675 = vpop.trf.xlu0
    %v2676 = vpop.trf.xlu0
    %v2677 = vpop.trf.xlu0
    %v2678 = vpop.trf.xlu0
    %v2679 = vpop.trf.xlu0
    %v2680 = vpop.trf.xlu0
    %v2681 = vpop.trf.xlu0
    %2682 = vxpose.xlu0.c.b16.start [1/8] %v2458, 128
    %2683 = vxpose.xlu0.c.b16.cont [2/8] %v2459, 128
    %2684 = vxpose.xlu0.c.b16.cont [3/8] %v2460, 128
    %2685 = vxpose.xlu0.c.b16.cont [4/8] %v2461, 128
    %2686 = vxpose.xlu0.c.b16.cont [5/8] %v2462, 128
    %2687 = vxpose.xlu0.c.b16.cont [6/8] %v2463, 128
    %2688 = vxpose.xlu0.c.b16.cont [7/8] %v2464, 128
    %2689 = vxpose.xlu0.c.b16.end [8/8] %v2465, 128
    %v2690 = vpop.trf.xlu0
    %v2691 = vpop.trf.xlu0
    %v2692 = vpop.trf.xlu0
    %v2693 = vpop.trf.xlu0
    %v2694 = vpop.trf.xlu0
    %v2695 = vpop.trf.xlu0
    %v2696 = vpop.trf.xlu0
    %v2697 = vpop.trf.xlu0
    %2698 = vxpose.xlu0.c.b16.start [1/8] %v2466, 128
    %2699 = vxpose.xlu0.c.b16.cont [2/8] %v2467, 128
    %2700 = vxpose.xlu0.c.b16.cont [3/8] %v2468, 128
    %2701 = vxpose.xlu0.c.b16.cont [4/8] %v2469, 128
    %2702 = vxpose.xlu0.c.b16.cont [5/8] %v2470, 128
    %2703 = vxpose.xlu0.c.b16.cont [6/8] %v2471, 128
    %2704 = vxpose.xlu0.c.b16.cont [7/8] %v2472, 128
    %2705 = vxpose.xlu0.c.b16.end [8/8] %v2473, 128
    %v2706 = vpop.trf.xlu0
    %v2707 = vpop.trf.xlu0
    %v2708 = vpop.trf.xlu0
    %v2709 = vpop.trf.xlu0
    %v2710 = vpop.trf.xlu0
    %v2711 = vpop.trf.xlu0
    %v2712 = vpop.trf.xlu0
    %v2713 = vpop.trf.xlu0
    %v2874 = vunpack.c.l.b16 %v1914
    %v2875 = vunpack.c.l.b16 %v1915
    %v2876 = vunpack.c.l.b16 %v1916
    %v2877 = vunpack.c.l.b16 %v1917
    %v2878 = vunpack.c.l.b16 %v1918
    %v2879 = vunpack.c.l.b16 %v1919
    %v2880 = vunpack.c.l.b16 %v1920
    %v2881 = vunpack.c.l.b16 %v1921
    %v2882 = vunpack.c.l.b16 %v1922
    %v2883 = vunpack.c.l.b16 %v1923
    %v2884 = vunpack.c.l.b16 %v1924
    %v2885 = vunpack.c.l.b16 %v1925
    %v2886 = vunpack.c.l.b16 %v1926
    %v2887 = vunpack.c.l.b16 %v1927
    %v2888 = vunpack.c.l.b16 %v1928
    %v2889 = vunpack.c.l.b16 %v1929
    %v2890 = vunpack.c.l.b16 %v1930
    %v2891 = vunpack.c.l.b16 %v1931
    %v2892 = vunpack.c.l.b16 %v1932
    %v2893 = vunpack.c.l.b16 %v1933
    %v2894 = vunpack.c.l.b16 %v1934
    %v2895 = vunpack.c.l.b16 %v1935
    %v2896 = vunpack.c.l.b16 %v1936
    %v2897 = vunpack.c.l.b16 %v1937
    %v2898 = vunpack.c.l.b16 %v1938
    %v2899 = vunpack.c.l.b16 %v1939
    %v2900 = vunpack.c.l.b16 %v1940
    %v2901 = vunpack.c.l.b16 %v1941
    %v2902 = vunpack.c.l.b16 %v1942
    %v2903 = vunpack.c.l.b16 %v1943
    %v2904 = vunpack.c.l.b16 %v1944
    %v2905 = vunpack.c.l.b16 %v1945
    %v2906 = vunpack.c.l.b16 %v1946
    %v2907 = vunpack.c.l.b16 %v1947
    %v2908 = vunpack.c.l.b16 %v1948
    %v2909 = vunpack.c.l.b16 %v1949
    %v2910 = vunpack.c.l.b16 %v1950
    %v2911 = vunpack.c.l.b16 %v1951
    %v2912 = vunpack.c.l.b16 %v1952
    %v2913 = vunpack.c.l.b16 %v1953
    %v2914 = vunpack.c.l.b16 %v1954
    %v2915 = vunpack.c.l.b16 %v1955
    %v2916 = vunpack.c.l.b16 %v1956
    %v2917 = vunpack.c.l.b16 %v1957
    %v2918 = vunpack.c.l.b16 %v1958
    %v2919 = vunpack.c.l.b16 %v1959
    %v2920 = vunpack.c.l.b16 %v1960
    %v2921 = vunpack.c.l.b16 %v1961
    %v2922 = vunpack.c.l.b16 %v1962
    %v2923 = vunpack.c.l.b16 %v1963
    %v2924 = vunpack.c.l.b16 %v1964
    %v2925 = vunpack.c.l.b16 %v1965
    %v2926 = vunpack.c.l.b16 %v1966
    %v2927 = vunpack.c.l.b16 %v1967
    %v2928 = vunpack.c.l.b16 %v1968
    %v2929 = vunpack.c.l.b16 %v1969
    %v2930 = vunpack.c.l.b16 %v1970
    %v2931 = vunpack.c.l.b16 %v1971
    %v2932 = vunpack.c.l.b16 %v1972
    %v2933 = vunpack.c.l.b16 %v1973
    %v2934 = vunpack.c.l.b16 %v1974
    %v2935 = vunpack.c.l.b16 %v1975
    %v2936 = vunpack.c.l.b16 %v1976
    %v2937 = vunpack.c.l.b16 %v1977
    %v2938 = vunpack.c.l.b16 %v1978
    %v2939 = vunpack.c.l.b16 %v1979
    %v2940 = vunpack.c.l.b16 %v1980
    %v2941 = vunpack.c.l.b16 %v1981
    %v2942 = vunpack.c.l.b16 %v1982
    %v2943 = vunpack.c.l.b16 %v1983
    %v2944 = vunpack.c.l.b16 %v1984
    %v2945 = vunpack.c.l.b16 %v1985
    %v2946 = vunpack.c.l.b16 %v1986
    %v2947 = vunpack.c.l.b16 %v1987
    %v2948 = vunpack.c.l.b16 %v1988
    %v2949 = vunpack.c.l.b16 %v1989
    %v2950 = vunpack.c.l.b16 %v1990
    %v2951 = vunpack.c.l.b16 %v1991
    %v2952 = vunpack.c.l.b16 %v1992
    %v2953 = vunpack.c.l.b16 %v1993
    %v2954 = vunpack.c.l.b16 %v1994
    %v2955 = vunpack.c.l.b16 %v1995
    %v2956 = vunpack.c.l.b16 %v1996
    %v2957 = vunpack.c.l.b16 %v1997
    %v2958 = vunpack.c.l.b16 %v1998
    %v2959 = vunpack.c.l.b16 %v1999
    %v2960 = vunpack.c.l.b16 %v2000
    %v2961 = vunpack.c.l.b16 %v2001
    %v2962 = vunpack.c.l.b16 %v2002
    %v2963 = vunpack.c.l.b16 %v2003
    %v2964 = vunpack.c.l.b16 %v2004
    %v2965 = vunpack.c.l.b16 %v2005
    %v2966 = vunpack.c.l.b16 %v2006
    %v2967 = vunpack.c.l.b16 %v2007
    %v2968 = vunpack.c.l.b16 %v2008
    %v2969 = vunpack.c.l.b16 %v2009
    %v2970 = vunpack.c.l.b16 %v2010
    %v2971 = vunpack.c.l.b16 %v2011
    %v2972 = vunpack.c.l.b16 %v2012
    %v2973 = vunpack.c.l.b16 %v2013
    %v2974 = vunpack.c.l.b16 %v2014
    %v2975 = vunpack.c.l.b16 %v2015
    %v2976 = vunpack.c.l.b16 %v2016
    %v2977 = vunpack.c.l.b16 %v2017
    %v2978 = vunpack.c.l.b16 %v2018
    %v2979 = vunpack.c.l.b16 %v2019
    %v2980 = vunpack.c.l.b16 %v2020
    %v2981 = vunpack.c.l.b16 %v2021
    %v2982 = vunpack.c.l.b16 %v2022
    %v2983 = vunpack.c.l.b16 %v2023
    %v2984 = vunpack.c.l.b16 %v2024
    %v2985 = vunpack.c.l.b16 %v2025
    %v2986 = vunpack.c.l.b16 %v2026
    %v2987 = vunpack.c.l.b16 %v2027
    %v2988 = vunpack.c.l.b16 %v2028
    %v2989 = vunpack.c.l.b16 %v2029
    %v2990 = vunpack.c.l.b16 %v2030
    %v2991 = vunpack.c.l.b16 %v2031
    %v2992 = vunpack.c.l.b16 %v2032
    %v2993 = vunpack.c.l.b16 %v2033
    %v2994 = vunpack.c.l.b16 %v2034
    %v2995 = vunpack.c.l.b16 %v2035
    %v2996 = vunpack.c.l.b16 %v2036
    %v2997 = vunpack.c.l.b16 %v2037
    %v2998 = vunpack.c.l.b16 %v2038
    %v2999 = vunpack.c.l.b16 %v2039
    %v3000 = vunpack.c.l.b16 %v2040
    %v3001 = vunpack.c.l.b16 %v2041
    %v3002 = vunpack.c.l.b16 %v2042
    %v3003 = vunpack.c.l.b16 %v2043
    %v3004 = vunpack.c.l.b16 %v2044
    %v3005 = vunpack.c.l.b16 %v2045
    %v3006 = vunpack.c.l.b16 %v2046
    %v3007 = vunpack.c.l.b16 %v2047
    %v3008 = vunpack.c.l.b16 %v2048
    %v3009 = vunpack.c.l.b16 %v2049
    %v3010 = vunpack.c.l.b16 %v2050
    %v3011 = vunpack.c.l.b16 %v2051
    %v3012 = vunpack.c.l.b16 %v2052
    %v3013 = vunpack.c.l.b16 %v2053
    %v3014 = vunpack.c.l.b16 %v2054
    %v3015 = vunpack.c.l.b16 %v2055
    %v3016 = vunpack.c.l.b16 %v2056
    %v3017 = vunpack.c.l.b16 %v2057
    %v3018 = vunpack.c.l.b16 %v2058
    %v3019 = vunpack.c.l.b16 %v2059
    %v3020 = vunpack.c.l.b16 %v2060
    %v3021 = vunpack.c.l.b16 %v2061
    %v3022 = vunpack.c.l.b16 %v2062
    %v3023 = vunpack.c.l.b16 %v2063
    %v3024 = vunpack.c.l.b16 %v2064
    %v3025 = vunpack.c.l.b16 %v2065
    %v3026 = vunpack.c.l.b16 %v2066
    %v3027 = vunpack.c.l.b16 %v2067
    %v3028 = vunpack.c.l.b16 %v2068
    %v3029 = vunpack.c.l.b16 %v2069
    %v3030 = vunpack.c.l.b16 %v2070
    %v3031 = vunpack.c.l.b16 %v2071
    %v3032 = vunpack.c.l.b16 %v2072
    %v3033 = vunpack.c.l.b16 %v2073
    %v3034 = vpack.c.b16 %v2875, %v2874
    %v3035 = vpack.c.b16 %v2877, %v2876
    %v3036 = vpack.c.b16 %v2879, %v2878
    %v3037 = vpack.c.b16 %v2881, %v2880
    %v3038 = vpack.c.b16 %v2883, %v2882
    %v3039 = vpack.c.b16 %v2885, %v2884
    %v3040 = vpack.c.b16 %v2887, %v2886
    %v3041 = vpack.c.b16 %v2889, %v2888
    %v3042 = vpack.c.b16 %v2891, %v2890
    %v3043 = vpack.c.b16 %v2893, %v2892
    %v3044 = vpack.c.b16 %v2895, %v2894
    %v3045 = vpack.c.b16 %v2897, %v2896
    %v3046 = vpack.c.b16 %v2899, %v2898
    %v3047 = vpack.c.b16 %v2901, %v2900
    %v3048 = vpack.c.b16 %v2903, %v2902
    %v3049 = vpack.c.b16 %v2905, %v2904
    %v3050 = vpack.c.b16 %v2907, %v2906
    %v3051 = vpack.c.b16 %v2909, %v2908
    %v3052 = vpack.c.b16 %v2911, %v2910
    %v3053 = vpack.c.b16 %v2913, %v2912
    %v3054 = vpack.c.b16 %v2915, %v2914
    %v3055 = vpack.c.b16 %v2917, %v2916
    %v3056 = vpack.c.b16 %v2919, %v2918
    %v3057 = vpack.c.b16 %v2921, %v2920
    %v3058 = vpack.c.b16 %v2923, %v2922
    %v3059 = vpack.c.b16 %v2925, %v2924
    %v3060 = vpack.c.b16 %v2927, %v2926
    %v3061 = vpack.c.b16 %v2929, %v2928
    %v3062 = vpack.c.b16 %v2931, %v2930
    %v3063 = vpack.c.b16 %v2933, %v2932
    %v3064 = vpack.c.b16 %v2935, %v2934
    %v3065 = vpack.c.b16 %v2937, %v2936
    %v3066 = vpack.c.b16 %v2939, %v2938
    %v3067 = vpack.c.b16 %v2941, %v2940
    %v3068 = vpack.c.b16 %v2943, %v2942
    %v3069 = vpack.c.b16 %v2945, %v2944
    %v3070 = vpack.c.b16 %v2947, %v2946
    %v3071 = vpack.c.b16 %v2949, %v2948
    %v3072 = vpack.c.b16 %v2951, %v2950
    %v3073 = vpack.c.b16 %v2953, %v2952
    %v3074 = vpack.c.b16 %v2955, %v2954
    %v3075 = vpack.c.b16 %v2957, %v2956
    %v3076 = vpack.c.b16 %v2959, %v2958
    %v3077 = vpack.c.b16 %v2961, %v2960
    %v3078 = vpack.c.b16 %v2963, %v2962
    %v3079 = vpack.c.b16 %v2965, %v2964
    %v3080 = vpack.c.b16 %v2967, %v2966
    %v3081 = vpack.c.b16 %v2969, %v2968
    %v3082 = vpack.c.b16 %v2971, %v2970
    %v3083 = vpack.c.b16 %v2973, %v2972
    %v3084 = vpack.c.b16 %v2975, %v2974
    %v3085 = vpack.c.b16 %v2977, %v2976
    %v3086 = vpack.c.b16 %v2979, %v2978
    %v3087 = vpack.c.b16 %v2981, %v2980
    %v3088 = vpack.c.b16 %v2983, %v2982
    %v3089 = vpack.c.b16 %v2985, %v2984
    %v3090 = vpack.c.b16 %v2987, %v2986
    %v3091 = vpack.c.b16 %v2989, %v2988
    %v3092 = vpack.c.b16 %v2991, %v2990
    %v3093 = vpack.c.b16 %v2993, %v2992
    %v3094 = vpack.c.b16 %v2995, %v2994
    %v3095 = vpack.c.b16 %v2997, %v2996
    %v3096 = vpack.c.b16 %v2999, %v2998
    %v3097 = vpack.c.b16 %v3001, %v3000
    %v3098 = vpack.c.b16 %v3003, %v3002
    %v3099 = vpack.c.b16 %v3005, %v3004
    %v3100 = vpack.c.b16 %v3007, %v3006
    %v3101 = vpack.c.b16 %v3009, %v3008
    %v3102 = vpack.c.b16 %v3011, %v3010
    %v3103 = vpack.c.b16 %v3013, %v3012
    %v3104 = vpack.c.b16 %v3015, %v3014
    %v3105 = vpack.c.b16 %v3017, %v3016
    %v3106 = vpack.c.b16 %v3019, %v3018
    %v3107 = vpack.c.b16 %v3021, %v3020
    %v3108 = vpack.c.b16 %v3023, %v3022
    %v3109 = vpack.c.b16 %v3025, %v3024
    %v3110 = vpack.c.b16 %v3027, %v3026
    %v3111 = vpack.c.b16 %v3029, %v3028
    %v3112 = vpack.c.b16 %v3031, %v3030
    %v3113 = vpack.c.b16 %v3033, %v3032
    %3194 = vmatpush.bf16.msra.mxu0 %v3041
    %3195 = vmatpush.bf16.msra.mxu0 %v3040
    %3196 = vmatpush.bf16.msra.mxu0 %v3039
    %3197 = vmatpush.bf16.msra.mxu0 %v3038
    %3198 = vmatpush.bf16.msra.mxu0 %v3037
    %3199 = vmatpush.bf16.msra.mxu0 %v3036
    %3200 = vmatpush.bf16.msra.mxu0 %v3035
    %3201 = vmatpush.bf16.msra.mxu0 %v3034
    %3202 = vmatmul.bf16.gmra.mxu0 %v2562
    %v3203 = vpop.f32.mrf.mxu0
    %v3204 = vadd.f32 0.0, %v3203
    %v3205 = vpop.f32.mrf.mxu0
    %v3206 = vadd.f32 0.0, %v3205
    %3207 = vmatmul.bf16.gmra.mxu0 %v2563
    %v3208 = vpop.f32.mrf.mxu0
    %v3209 = vadd.f32 0.0, %v3208
    %v3210 = vpop.f32.mrf.mxu0
    %v3211 = vadd.f32 0.0, %v3210
    %3212 = vmatmul.bf16.gmra.mxu0 %v2564
    %v3213 = vpop.f32.mrf.mxu0
    %v3214 = vadd.f32 0.0, %v3213
    %v3215 = vpop.f32.mrf.mxu0
    %v3216 = vadd.f32 0.0, %v3215
    %3217 = vmatmul.bf16.gmra.mxu0 %v2565
    %v3218 = vpop.f32.mrf.mxu0
    %v3219 = vadd.f32 0.0, %v3218
    %v3220 = vpop.f32.mrf.mxu0
    %3221 = vdwg.mxu0
    %3222 = vmatpush.bf16.msra.mxu0 %v3049
    %3223 = vmatpush.bf16.msra.mxu0 %v3048
    %3224 = vmatpush.bf16.msra.mxu0 %v3047
    %3225 = vmatpush.bf16.msra.mxu0 %v3046
    %3226 = vmatpush.bf16.msra.mxu0 %v3045
    %3227 = vmatpush.bf16.msra.mxu0 %v3044
    %3228 = vmatpush.bf16.msra.mxu0 %v3043
    %3229 = vmatpush.bf16.msra.mxu0 %v3042
    %3230 = vmatmul.bf16.gmra.mxu0 %v2578
    %v3231 = vpop.f32.mrf.mxu0
    %v3232 = vadd.f32 %v3204, %v3231
    %v3233 = vpop.f32.mrf.mxu0
    %v3234 = vadd.f32 %v3206, %v3233
    %3235 = vmatmul.bf16.gmra.mxu0 %v2579
    %v3236 = vpop.f32.mrf.mxu0
    %v3237 = vadd.f32 %v3209, %v3236
    %v3238 = vpop.f32.mrf.mxu0
    %v3239 = vadd.f32 %v3211, %v3238
    %3240 = vmatmul.bf16.gmra.mxu0 %v2580
    %v3241 = vpop.f32.mrf.mxu0
    %v3242 = vadd.f32 %v3214, %v3241
    %v3243 = vpop.f32.mrf.mxu0
    %v3244 = vadd.f32 %v3216, %v3243
    %3245 = vmatmul.bf16.gmra.mxu0 %v2581
    %v3246 = vpop.f32.mrf.mxu0
    %v3247 = vadd.f32 %v3219, %v3246
    %v3248 = vpop.f32.mrf.mxu0
    %3249 = vdwg.mxu0
    %3250 = vmatpush.bf16.msra.mxu0 %v3057
    %3251 = vmatpush.bf16.msra.mxu0 %v3056
    %3252 = vmatpush.bf16.msra.mxu0 %v3055
    %3253 = vmatpush.bf16.msra.mxu0 %v3054
    %3254 = vmatpush.bf16.msra.mxu0 %v3053
    %3255 = vmatpush.bf16.msra.mxu0 %v3052
    %3256 = vmatpush.bf16.msra.mxu0 %v3051
    %3257 = vmatpush.bf16.msra.mxu0 %v3050
    %3258 = vmatmul.bf16.gmra.mxu0 %v2594
    %v3259 = vpop.f32.mrf.mxu0
    %v3260 = vadd.f32 %v3232, %v3259
    %v3261 = vpop.f32.mrf.mxu0
    %v3262 = vadd.f32 %v3234, %v3261
    %3263 = vmatmul.bf16.gmra.mxu0 %v2595
    %v3264 = vpop.f32.mrf.mxu0
    %v3265 = vadd.f32 %v3237, %v3264
    %v3266 = vpop.f32.mrf.mxu0
    %v3267 = vadd.f32 %v3239, %v3266
    %3268 = vmatmul.bf16.gmra.mxu0 %v2596
    %v3269 = vpop.f32.mrf.mxu0
    %v3270 = vadd.f32 %v3242, %v3269
    %v3271 = vpop.f32.mrf.mxu0
    %v3272 = vadd.f32 %v3244, %v3271
    %3273 = vmatmul.bf16.gmra.mxu0 %v2597
    %v3274 = vpop.f32.mrf.mxu0
    %v3275 = vadd.f32 %v3247, %v3274
    %v3276 = vpop.f32.mrf.mxu0
    %3277 = vdwg.mxu0
    %3278 = vmatpush.bf16.msra.mxu0 %v3065
    %3279 = vmatpush.bf16.msra.mxu0 %v3064
    %3280 = vmatpush.bf16.msra.mxu0 %v3063
    %3281 = vmatpush.bf16.msra.mxu0 %v3062
    %3282 = vmatpush.bf16.msra.mxu0 %v3061
    %3283 = vmatpush.bf16.msra.mxu0 %v3060
    %3284 = vmatpush.bf16.msra.mxu0 %v3059
    %3285 = vmatpush.bf16.msra.mxu0 %v3058
    %3286 = vmatmul.bf16.gmra.mxu0 %v2610
    %v3287 = vpop.f32.mrf.mxu0
    %v3288 = vadd.f32 %v3260, %v3287
    %v3289 = vpop.f32.mrf.mxu0
    %v3290 = vadd.f32 %v3262, %v3289
    %3291 = vmatmul.bf16.gmra.mxu0 %v2611
    %v3292 = vpop.f32.mrf.mxu0
    %v3293 = vadd.f32 %v3265, %v3292
    %v3294 = vpop.f32.mrf.mxu0
    %v3295 = vadd.f32 %v3267, %v3294
    %3296 = vmatmul.bf16.gmra.mxu0 %v2612
    %v3297 = vpop.f32.mrf.mxu0
    %v3298 = vadd.f32 %v3270, %v3297
    %v3299 = vpop.f32.mrf.mxu0
    %v3300 = vadd.f32 %v3272, %v3299
    %3301 = vmatmul.bf16.gmra.mxu0 %v2613
    %v3302 = vpop.f32.mrf.mxu0
    %v3303 = vadd.f32 %v3275, %v3302
    %v3304 = vpop.f32.mrf.mxu0
    %3305 = vdwg.mxu0
    %3306 = vmatpush.bf16.msra.mxu0 %v3073
    %3307 = vmatpush.bf16.msra.mxu0 %v3072
    %3308 = vmatpush.bf16.msra.mxu0 %v3071
    %3309 = vmatpush.bf16.msra.mxu0 %v3070
    %3310 = vmatpush.bf16.msra.mxu0 %v3069
    %3311 = vmatpush.bf16.msra.mxu0 %v3068
    %3312 = vmatpush.bf16.msra.mxu0 %v3067
    %3313 = vmatpush.bf16.msra.mxu0 %v3066
    %3314 = vmatmul.bf16.gmra.mxu0 %v2626
    %v3315 = vpop.f32.mrf.mxu0
    %v3316 = vadd.f32 %v3288, %v3315
    %v3317 = vpop.f32.mrf.mxu0
    %v3318 = vadd.f32 %v3290, %v3317
    %3319 = vmatmul.bf16.gmra.mxu0 %v2627
    %v3320 = vpop.f32.mrf.mxu0
    %v3321 = vadd.f32 %v3293, %v3320
    %v3322 = vpop.f32.mrf.mxu0
    %v3323 = vadd.f32 %v3295, %v3322
    %3324 = vmatmul.bf16.gmra.mxu0 %v2628
    %v3325 = vpop.f32.mrf.mxu0
    %v3326 = vadd.f32 %v3298, %v3325
    %v3327 = vpop.f32.mrf.mxu0
    %v3328 = vadd.f32 %v3300, %v3327
    %3329 = vmatmul.bf16.gmra.mxu0 %v2629
    %v3330 = vpop.f32.mrf.mxu0
    %v3331 = vadd.f32 %v3303, %v3330
    %v3332 = vpop.f32.mrf.mxu0
    %3333 = vdwg.mxu0
    %3334 = vmatpush.bf16.msra.mxu0 %v3081
    %3335 = vmatpush.bf16.msra.mxu0 %v3080
    %3336 = vmatpush.bf16.msra.mxu0 %v3079
    %3337 = vmatpush.bf16.msra.mxu0 %v3078
    %3338 = vmatpush.bf16.msra.mxu0 %v3077
    %3339 = vmatpush.bf16.msra.mxu0 %v3076
    %3340 = vmatpush.bf16.msra.mxu0 %v3075
    %3341 = vmatpush.bf16.msra.mxu0 %v3074
    %3342 = vmatmul.bf16.gmra.mxu0 %v2642
    %v3343 = vpop.f32.mrf.mxu0
    %v3344 = vadd.f32 %v3316, %v3343
    %v3345 = vpop.f32.mrf.mxu0
    %v3346 = vadd.f32 %v3318, %v3345
    %3347 = vmatmul.bf16.gmra.mxu0 %v2643
    %v3348 = vpop.f32.mrf.mxu0
    %v3349 = vadd.f32 %v3321, %v3348
    %v3350 = vpop.f32.mrf.mxu0
    %v3351 = vadd.f32 %v3323, %v3350
    %3352 = vmatmul.bf16.gmra.mxu0 %v2644
    %v3353 = vpop.f32.mrf.mxu0
    %v3354 = vadd.f32 %v3326, %v3353
    %v3355 = vpop.f32.mrf.mxu0
    %v3356 = vadd.f32 %v3328, %v3355
    %3357 = vmatmul.bf16.gmra.mxu0 %v2645
    %v3358 = vpop.f32.mrf.mxu0
    %v3359 = vadd.f32 %v3331, %v3358
    %v3360 = vpop.f32.mrf.mxu0
    %3361 = vdwg.mxu0
    %3362 = vmatpush.bf16.msra.mxu0 %v3089
    %3363 = vmatpush.bf16.msra.mxu0 %v3088
    %3364 = vmatpush.bf16.msra.mxu0 %v3087
    %3365 = vmatpush.bf16.msra.mxu0 %v3086
    %3366 = vmatpush.bf16.msra.mxu0 %v3085
    %3367 = vmatpush.bf16.msra.mxu0 %v3084
    %3368 = vmatpush.bf16.msra.mxu0 %v3083
    %3369 = vmatpush.bf16.msra.mxu0 %v3082
    %3370 = vmatmul.bf16.gmra.mxu0 %v2658
    %v3371 = vpop.f32.mrf.mxu0
    %v3372 = vadd.f32 %v3344, %v3371
    %v3373 = vpop.f32.mrf.mxu0
    %v3374 = vadd.f32 %v3346, %v3373
    %3375 = vmatmul.bf16.gmra.mxu0 %v2659
    %v3376 = vpop.f32.mrf.mxu0
    %v3377 = vadd.f32 %v3349, %v3376
    %v3378 = vpop.f32.mrf.mxu0
    %v3379 = vadd.f32 %v3351, %v3378
    %3380 = vmatmul.bf16.gmra.mxu0 %v2660
    %v3381 = vpop.f32.mrf.mxu0
    %v3382 = vadd.f32 %v3354, %v3381
    %v3383 = vpop.f32.mrf.mxu0
    %v3384 = vadd.f32 %v3356, %v3383
    %3385 = vmatmul.bf16.gmra.mxu0 %v2661
    %v3386 = vpop.f32.mrf.mxu0
    %v3387 = vadd.f32 %v3359, %v3386
    %v3388 = vpop.f32.mrf.mxu0
    %3389 = vdwg.mxu0
    %3390 = vmatpush.bf16.msra.mxu0 %v3097
    %3391 = vmatpush.bf16.msra.mxu0 %v3096
    %3392 = vmatpush.bf16.msra.mxu0 %v3095
    %3393 = vmatpush.bf16.msra.mxu0 %v3094
    %3394 = vmatpush.bf16.msra.mxu0 %v3093
    %3395 = vmatpush.bf16.msra.mxu0 %v3092
    %3396 = vmatpush.bf16.msra.mxu0 %v3091
    %3397 = vmatpush.bf16.msra.mxu0 %v3090
    %3398 = vmatmul.bf16.gmra.mxu0 %v2674
    %v3399 = vpop.f32.mrf.mxu0
    %v3400 = vadd.f32 %v3372, %v3399
    %v3401 = vpop.f32.mrf.mxu0
    %v3402 = vadd.f32 %v3374, %v3401
    %3403 = vmatmul.bf16.gmra.mxu0 %v2675
    %v3404 = vpop.f32.mrf.mxu0
    %v3405 = vadd.f32 %v3377, %v3404
    %v3406 = vpop.f32.mrf.mxu0
    %v3407 = vadd.f32 %v3379, %v3406
    %3408 = vmatmul.bf16.gmra.mxu0 %v2676
    %v3409 = vpop.f32.mrf.mxu0
    %v3410 = vadd.f32 %v3382, %v3409
    %v3411 = vpop.f32.mrf.mxu0
    %v3412 = vadd.f32 %v3384, %v3411
    %3413 = vmatmul.bf16.gmra.mxu0 %v2677
    %v3414 = vpop.f32.mrf.mxu0
    %v3415 = vadd.f32 %v3387, %v3414
    %v3416 = vpop.f32.mrf.mxu0
    %3417 = vdwg.mxu0
    %3418 = vmatpush.bf16.msra.mxu0 %v3105
    %3419 = vmatpush.bf16.msra.mxu0 %v3104
    %3420 = vmatpush.bf16.msra.mxu0 %v3103
    %3421 = vmatpush.bf16.msra.mxu0 %v3102
    %3422 = vmatpush.bf16.msra.mxu0 %v3101
    %3423 = vmatpush.bf16.msra.mxu0 %v3100
    %3424 = vmatpush.bf16.msra.mxu0 %v3099
    %3425 = vmatpush.bf16.msra.mxu0 %v3098
    %3426 = vmatmul.bf16.gmra.mxu0 %v2690
    %v3427 = vpop.f32.mrf.mxu0
    %v3428 = vadd.f32 %v3400, %v3427
    %v3429 = vpop.f32.mrf.mxu0
    %v3430 = vadd.f32 %v3402, %v3429
    %3431 = vmatmul.bf16.gmra.mxu0 %v2691
    %v3432 = vpop.f32.mrf.mxu0
    %v3433 = vadd.f32 %v3405, %v3432
    %v3434 = vpop.f32.mrf.mxu0
    %v3435 = vadd.f32 %v3407, %v3434
    %3436 = vmatmul.bf16.gmra.mxu0 %v2692
    %v3437 = vpop.f32.mrf.mxu0
    %v3438 = vadd.f32 %v3410, %v3437
    %v3439 = vpop.f32.mrf.mxu0
    %v3440 = vadd.f32 %v3412, %v3439
    %3441 = vmatmul.bf16.gmra.mxu0 %v2693
    %v3442 = vpop.f32.mrf.mxu0
    %v3443 = vadd.f32 %v3415, %v3442
    %v3444 = vpop.f32.mrf.mxu0
    %3445 = vdwg.mxu0
    %3446 = vmatpush.bf16.msra.mxu0 %v3113
    %3447 = vmatpush.bf16.msra.mxu0 %v3112
    %3448 = vmatpush.bf16.msra.mxu0 %v3111
    %3449 = vmatpush.bf16.msra.mxu0 %v3110
    %3450 = vmatpush.bf16.msra.mxu0 %v3109
    %3451 = vmatpush.bf16.msra.mxu0 %v3108
    %3452 = vmatpush.bf16.msra.mxu0 %v3107
    %3453 = vmatpush.bf16.msra.mxu0 %v3106
    %3454 = vmatmul.bf16.gmra.mxu0 %v2706
    %v3455 = vpop.f32.mrf.mxu0
    %v3456 = vadd.f32 %v3428, %v3455
    %v3457 = vpop.f32.mrf.mxu0
    %v3458 = vadd.f32 %v3430, %v3457
    %3459 = vmatmul.bf16.gmra.mxu0 %v2707
    %v3460 = vpop.f32.mrf.mxu0
    %v3461 = vadd.f32 %v3433, %v3460
    %v3462 = vpop.f32.mrf.mxu0
    %v3463 = vadd.f32 %v3435, %v3462
    %3464 = vmatmul.bf16.gmra.mxu0 %v2708
    %v3465 = vpop.f32.mrf.mxu0
    %v3466 = vadd.f32 %v3438, %v3465
    %v3467 = vpop.f32.mrf.mxu0
    %v3468 = vadd.f32 %v3440, %v3467
    %3469 = vmatmul.bf16.gmra.mxu0 %v2709
    %v3470 = vpop.f32.mrf.mxu0
    %v3471 = vadd.f32 %v3443, %v3470
    %v3472 = vpop.f32.mrf.mxu0
    %3473 = vdwg.mxu0
    %v3474 = vadd.f32 %v3456, %v3458
    %v3475 = vadd.f32 %v3474, %v3461
    %v3476 = vadd.f32 %v3475, %v3463
    %v3477 = vadd.f32 %v3476, %v3466
    %v3478 = vadd.f32 %v3477, %v3468
    %v3479 = vsel %vm1740, %v3471, 0.0
    %v3480 = vadd.f32 %v3478, %v3479
    %v3481 = vrot.slane %v3480, 4
    %v3482 = vadd.f32 %v3480, %v3481
    %v3483 = vrot.slane %v3482, 2
    %v3484 = vadd.f32 %v3482, %v3483
    %v3485 = vrot.slane %v3484, 1
    %v3486 = vadd.f32 %v3484, %v3485
    %v3487 = vmul.f32 %v3486, 0.020408163
    %v3488 = vld [vmem:[%s2] sm:$0x1]
    %v3489 = vadd.f32 %v3487, %v3488
    %3490 = vst [vmem:[#allocation2 + $0x1] sm:$0x1] %v3489
    // Predicated region
    $region14: #{tpu_custom_call.1} parent=1 // pred_check
      _
    $region15: #{tpu_custom_call.1} parent=1 // pred_check_branch
      %3492 = sbr.rel (0) target = $region17
    $region16: #{tpu_custom_call.1} parent=1 // pred_region
      %3494 = vsyncadd [#allocation3], 0
      %s3496 = sshll.u32 [#allocation2], 4
      %s3497 = int_to_ptr.vmem [resolvable:$true] %s3496
      %s3498 = sshll.u32 %s3, 4
      %s3499 = int_to_ptr.hbm [resolvable:$true] %s3498
      %3501 = dma.vmem_to_hbm [thread:$0]  %s3497, 32, %s3499, [#allocation3]
    $region17: #{tpu_custom_call.1} parent=1 // pred_fallthru
      _
    // Predicated region
    $region18: #{tpu_custom_call.1} parent=1 // pred_check
      _
    $region19: #{tpu_custom_call.1} parent=1 // pred_check_branch
      %3503 = sbr.rel (0) target = $region21
    $region20: #{tpu_custom_call.1} parent=1 // pred_region
      %3505 = dma.done [#allocation3], 32
    $region21: #{tpu_custom_call.1} parent=1 // pred_fallthru
      _
    %3506 = vsyncpa [#allocation3], 1

</llo_original>
